<compile_context>
chip_gen: v7x
topology: tpu7x:2x2x1
jax: 0.10.0
libtpu: 0.0.40
codegen_flags: <defaults>
</compile_context>

<pallas_src>
import numpy as np
import jax
import jax.numpy as jnp
from jax import lax
from jax.experimental import pallas as pl
from jax.experimental.pallas import tpu as pltpu


# ----------------------------------------------------------------------------
# Deterministic synthetic "all_normalized_hpf_list" (shapes vary, padded to 5x5
# by build_filters, exactly like the PyTorch module's __init__).
# ----------------------------------------------------------------------------
def make_all_normalized_hpf_list(num_filters=30):
    rng = np.random.RandomState(0)
    shapes = [(3, 3), (5, 5), (3, 5), (5, 3)]
    filters = []
    for i in range(num_filters):
        h, w = shapes[i % len(shapes)]
        f = rng.randint(-2, 3, size=(h, w)).astype(np.float32)
        f = f - f.mean()
        norm = np.abs(f).sum()
        if norm > 0:
            f = f / norm
        filters.append(f)
    return filters


def build_filters(all_normalized_hpf_list):
    filters = []
    for hpf_item in all_normalized_hpf_list:
        row_1 = int((5 - hpf_item.shape[0]) / 2)
        row_2 = int(5 - hpf_item.shape[0] - row_1)
        col_1 = int((5 - hpf_item.shape[1]) / 2)
        col_2 = int(5 - hpf_item.shape[1] - col_1)
        hpf_item = np.pad(hpf_item, pad_width=((row_1, row_2), (col_1, col_2)),
                          mode='constant')
        filters.append(hpf_item)
    return filters


def _round_up(x, m):
    return ((x + m - 1) // m) * m


# ----------------------------------------------------------------------------
# Pallas kernel
# ----------------------------------------------------------------------------
def _make_mixed_hpf_kernel(G, F, K_pad, Wp, LSTRIDE, HW, Lin, threshold):
    Ltot = G * LSTRIDE  # patch lane extent (128-aligned)

    def kernel(x_ref, filt_ref, w_ref, sel_ref, out_ref, p_ref):
        # x_ref:    (1, Lin)        f32  G padded planes, per-item stride LSTRIDE
        # filt_ref: (F_pad, K_pad)  bf16 filter bank (taps on lanes, zero padded)
        # w_ref:    (F_pad, 1)      f32  per-filter mixing weights
        # sel_ref:  (LSTRIDE, HW)   bf16 0/1 column-compaction matrix
        # out_ref:  (G, F, HW)      f32  dense per-item output
        # p_ref:    (K_pad, Ltot)   f32  im2col patch scratch

        # ---- im2col: 25 shifted windows via XLU rolls, stored as full 8-row
        # slabs (no single-sublane masked stores).  Tap t = di*5+dj needs the
        # base plane left-shifted by di*Wp + dj; raster order makes each step
        # a shift of 1 (within a dj group) or Wp-4 (between di groups).
        sub8 = lax.broadcasted_iota(jnp.int32, (8, Ltot), 0)
        cur = x_ref[0:1, :]                              # (1, Lin) f32
        slab = jnp.zeros((8, Ltot), jnp.float32)
        for di in range(5):
            for dj in range(5):
                t = di * 5 + dj
                if t > 0:
                    d = 1 if dj > 0 else (Wp - 4)
                    cur = pltpu.roll(cur, shift=Lin - d, axis=1)  # left-shift by d
                row = jnp.broadcast_to(cur[:, :Ltot], (8, Ltot))
                slab = jnp.where(sub8 == (t % 8), row, slab)
                if t % 8 == 7:
                    p_ref[t - 7:t + 1, :] = slab
                    slab = jnp.zeros((8, Ltot), jnp.float32)
        # Last slab: tap 24 in row 0, rows 25..31 stay zero so the zero filter
        # columns never multiply stale scratch (no separate tail zeroing pass).
        p_ref[K_pad - 8:K_pad, :] = slab

        # ---- per-item exact compaction: drop conv-padding wrap-around columns
        # before the filter matmul.  bf16 x {0,1} products are exact, so this
        # is pure (MXU) column selection.
        sel = sel_ref[...]
        pieces = []
        for g in range(G):
            pg = p_ref[:, g * LSTRIDE:(g + 1) * LSTRIDE].astype(jnp.bfloat16)
            cg = jnp.dot(pg, sel, preferred_element_type=jnp.float32)
            pieces.append(cg.astype(jnp.bfloat16))
        cpatch = pieces[0] if G == 1 else jnp.concatenate(pieces, axis=1)

        # ---- whole filter bank x all G items in one bf16 MXU matmul, then TLU
        # clamp and per-filter scalar mixing weight; lane-dense per-item store.
        raw = jnp.dot(filt_ref[...], cpatch, preferred_element_type=jnp.float32)
        res = jnp.clip(raw, -threshold, threshold) * w_ref[...]
        for g in range(G):
            out_ref[g] = res[:F, g * HW:(g + 1) * HW]

    return kernel


def mixed_hpf_forward(x, weights, filters, threshold=5.0, items_per_step=None):
    """x: (N, 1, H, W) f32, weights: (F,) f32, filters: (F, 5, 5) f32."""
    N, C, H, W = x.shape
    assert C == 1, "MixedHpf convs are Conv2d(1, 1, ...)"
    F = int(filters.shape[0])
    K = 25
    F_pad = _round_up(F, 8)
    K_pad = 32
    HW = H * W                          # per-item dense output columns
    Wp = W + 4                          # padded row stride (conv padding=2)
    Hp = H + 4
    LSTRIDE = _round_up(Hp * Wp, 128)   # 128-aligned per-item flat stride
    TAIL = _round_up(4 * Wp + 4, 128)   # covers the largest tap offset

    # Items per grid step: whole (small) batch in one step amortizes the
    # per-step overhead and widens the single MXU RHS.
    G = items_per_step or max(1, min(8, N))
    num_steps = -(-N // G)
    N_pad = num_steps * G
    Ltot = G * LSTRIDE
    Lin = Ltot + TAIL

    # ---- inputs --------------------------------------------------------------
    # Zero-pad each plane (2 each side), flatten, pad to the 128-aligned stride,
    # and concatenate G items per grid-step row (plus a zero tail so every tap
    # window stays in-bounds).
    # TODO(synk): for large images, tile rows and zero-pad in-kernel (DMA raw
    # rows into a pre-zeroed VMEM scratch, v7x-sized: <=~24 MiB of blocks under
    # its 64 MiB VMEM) instead of this jnp.pad round trip through HBM.
    x_plane = x[:, 0, :, :].astype(jnp.float32)
    if N_pad != N:
        x_plane = jnp.pad(x_plane, ((0, N_pad - N), (0, 0), (0, 0)))
    x_pad = jnp.pad(x_plane, ((0, 0), (2, 2), (2, 2)))            # (N_pad, Hp, Wp)
    x_flat = x_pad.reshape(N_pad, Hp * Wp)
    x_flat = jnp.pad(x_flat, ((0, 0), (0, LSTRIDE - Hp * Wp)))    # (N_pad, LSTRIDE)
    x_cat = x_flat.reshape(num_steps, Ltot)
    x_cat = jnp.pad(x_cat, ((0, 0), (0, TAIL)))                   # (num_steps, Lin)

    # Filter bank and mixing weights as matmul operands (bf16 filters).
    filt2d = jnp.zeros((F_pad, K_pad), jnp.float32)
    filt2d = filt2d.at[:F, :K].set(filters.reshape(F, K).astype(jnp.float32))
    filt2d = filt2d.astype(jnp.bfloat16)
    w_col = jnp.zeros((F_pad, 1), jnp.float32).at[:F, 0].set(
        weights.astype(jnp.float32))

    # 0/1 selection matrix: patch column i*Wp + j  ->  output column i*W + j.
    sel_np = np.zeros((LSTRIDE, HW), np.float32)
    src = (np.arange(H)[:, None] * Wp + np.arange(W)[None, :]).reshape(-1)
    sel_np[src, np.arange(HW)] = 1.0
    sel = jnp.asarray(sel_np, dtype=jnp.bfloat16)

    kernel = _make_mixed_hpf_kernel(G, F, K_pad, Wp, LSTRIDE, HW, Lin, threshold)

    out = pl.pallas_call(
        kernel,
        out_shape=jax.ShapeDtypeStruct((N_pad, F, HW), jnp.float32),
        grid_spec=pltpu.PrefetchScalarGridSpec(
            num_scalar_prefetch=0,
            grid=(num_steps,),
            in_specs=[
                pl.BlockSpec((1, Lin), lambda n: (n, 0)),
                pl.BlockSpec((F_pad, K_pad), lambda n: (0, 0)),
                pl.BlockSpec((F_pad, 1), lambda n: (0, 0)),
                pl.BlockSpec((LSTRIDE, HW), lambda n: (0, 0)),
            ],
            out_specs=pl.BlockSpec((G, F, HW), lambda n: (n, 0, 0)),
            scratch_shapes=[pltpu.VMEM((K_pad, Ltot), jnp.float32)],
        ),
        compiler_params=pltpu.CompilerParams(
            dimension_semantics=("parallel",)),
    )(x_cat, filt2d, w_col, sel)

    if N_pad != N:
        out = out[:N]
    return out.reshape(N, F, H, W)       # free trailing-dim split, no compaction copy


# ----------------------------------------------------------------------------
# Pure-JAX reference (matches the PyTorch forward semantics).
# ----------------------------------------------------------------------------
def mixed_hpf_reference(x, weights, filters, threshold=5.0):
    F = filters.shape[0]
    w_oihw = filters.reshape(F, 1, 5, 5).astype(jnp.float32)
    conv = lax.conv_general_dilated(
        x.astype(jnp.float32), w_oihw,
        window_strides=(1, 1), padding=((2, 2), (2, 2)),
        dimension_numbers=('NCHW', 'OIHW', 'NCHW'))
    clamped = jnp.clip(conv, -threshold, threshold)
    return clamped * weights.reshape(1, F, 1, 1)


if __name__ == "__main__":
    # Deterministic parameter setup (synthetic filter bank, padded to 5x5).
    hpf_list = make_all_normalized_hpf_list(num_filters=30)
    filters_np = np.stack(build_filters(hpf_list), axis=0)    # (30, 5, 5)
    # Quantize test data to bf16-representable f32 so the bf16 MXU matmuls and
    # the XLA conv reference differ only by f32 accumulation order.
    filters = jnp.asarray(filters_np, dtype=jnp.float32)
    filters = filters.astype(jnp.bfloat16).astype(jnp.float32)

    key = jax.random.PRNGKey(0)
    kx, kw = jax.random.split(key)
    x = jax.random.normal(kx, (2, 1, 16, 16), dtype=jnp.float32) * 4.0
    x = x.astype(jnp.bfloat16).astype(jnp.float32)
    weights = jax.random.uniform(kw, (filters.shape[0],), dtype=jnp.float32)

    out = jax.block_until_ready(mixed_hpf_forward(x, weights, filters))
    ref = jax.block_until_ready(mixed_hpf_reference(x, weights, filters))
    np.testing.assert_allclose(np.asarray(out), np.asarray(ref),
                               rtol=1e-5, atol=2e-4)
    print("KERNEL_OK")
</pallas_src>

<mosaic_0001>
module attributes {stable_mosaic.version = 11 : i64} {
  func.func @kernel(%arg0: i32, %arg1: memref<1x1152xf32, #tpu.memory_space<vmem>>, %arg2: memref<32x32xbf16, #tpu.memory_space<vmem>>, %arg3: memref<32x1xf32, #tpu.memory_space<vmem>>, %arg4: memref<512x256xbf16, #tpu.memory_space<vmem>>, %arg5: memref<2x30x256xf32, #tpu.memory_space<vmem>>, %arg6: memref<32x1024xf32, #tpu.memory_space<vmem>>) attributes {dimension_semantics = [#tpu.dimension_semantics<parallel>], iteration_bounds = array<i64: 1>, scalar_prefetch = 0 : i64, scratch_operands = 1 : i64, tpu.core_type = #tpu.core_type<tc>, window_params = [{transform_indices = @transform_0, window_bounds = array<i64: 1, 1152>}, {pipeline_mode = #tpu.pipeline_mode<synchronous>, transform_indices = @transform_1, window_bounds = array<i64: 32, 32>}, {pipeline_mode = #tpu.pipeline_mode<synchronous>, transform_indices = @transform_2, window_bounds = array<i64: 32, 1>}, {pipeline_mode = #tpu.pipeline_mode<synchronous>, transform_indices = @transform_3, window_bounds = array<i64: 512, 256>}, {transform_indices = @transform_4, window_bounds = array<i64: 2, 30, 256>}]} {
    %0 = tpu.iota {dimensions = array<i32: 0>} : vector<8x1024xi32>
    %c0 = arith.constant 0 : index
    %c0_0 = arith.constant 0 : index
    %1 = vector.load %arg1[%c0, %c0_0] : memref<1x1152xf32, #tpu.memory_space<vmem>>, vector<1x1152xf32>
    %cst = arith.constant 0.000000e+00 : f32
    %2 = vector.broadcast %cst : f32 to vector<8x1024xf32>
    %3 = vector.extract_strided_slice %1 {offsets = [0, 0], sizes = [1, 1024], strides = [1, 1]} : vector<1x1152xf32> to vector<1x1024xf32>
    %4 = vector.shape_cast %3 : vector<1x1024xf32> to vector<1x1024xf32>
    %5 = vector.broadcast %4 : vector<1x1024xf32> to vector<8x1024xf32>
    %c0_i32 = arith.constant 0 : i32
    %6 = vector.broadcast %c0_i32 : i32 to vector<8x1024xi32>
    %7 = arith.cmpi eq, %0, %6 : vector<8x1024xi32>
    %8 = arith.select %7, %5, %2 : vector<8x1024xi1>, vector<8x1024xf32>
    %c1151_i32 = arith.constant 1151 : i32
    %9 = tpu.dynamic_rotate %1 by %c1151_i32 dim 1 : vector<1x1152xf32>, i32 -> vector<1x1152xf32>
    %10 = vector.extract_strided_slice %9 {offsets = [0, 0], sizes = [1, 1024], strides = [1, 1]} : vector<1x1152xf32> to vector<1x1024xf32>
    %11 = vector.shape_cast %10 : vector<1x1024xf32> to vector<1x1024xf32>
    %12 = vector.broadcast %11 : vector<1x1024xf32> to vector<8x1024xf32>
    %c1_i32 = arith.constant 1 : i32
    %13 = vector.broadcast %c1_i32 : i32 to vector<8x1024xi32>
    %14 = arith.cmpi eq, %0, %13 : vector<8x1024xi32>
    %15 = arith.select %14, %12, %8 : vector<8x1024xi1>, vector<8x1024xf32>
    %c1151_i32_1 = arith.constant 1151 : i32
    %16 = tpu.dynamic_rotate %9 by %c1151_i32_1 dim 1 : vector<1x1152xf32>, i32 -> vector<1x1152xf32>
    %17 = vector.extract_strided_slice %16 {offsets = [0, 0], sizes = [1, 1024], strides = [1, 1]} : vector<1x1152xf32> to vector<1x1024xf32>
    %18 = vector.shape_cast %17 : vector<1x1024xf32> to vector<1x1024xf32>
    %19 = vector.broadcast %18 : vector<1x1024xf32> to vector<8x1024xf32>
    %c2_i32 = arith.constant 2 : i32
    %20 = vector.broadcast %c2_i32 : i32 to vector<8x1024xi32>
    %21 = arith.cmpi eq, %0, %20 : vector<8x1024xi32>
    %22 = arith.select %21, %19, %15 : vector<8x1024xi1>, vector<8x1024xf32>
    %c1151_i32_2 = arith.constant 1151 : i32
    %23 = tpu.dynamic_rotate %16 by %c1151_i32_2 dim 1 : vector<1x1152xf32>, i32 -> vector<1x1152xf32>
    %24 = vector.extract_strided_slice %23 {offsets = [0, 0], sizes = [1, 1024], strides = [1, 1]} : vector<1x1152xf32> to vector<1x1024xf32>
    %25 = vector.shape_cast %24 : vector<1x1024xf32> to vector<1x1024xf32>
    %26 = vector.broadcast %25 : vector<1x1024xf32> to vector<8x1024xf32>
    %c3_i32 = arith.constant 3 : i32
    %27 = vector.broadcast %c3_i32 : i32 to vector<8x1024xi32>
    %28 = arith.cmpi eq, %0, %27 : vector<8x1024xi32>
    %29 = arith.select %28, %26, %22 : vector<8x1024xi1>, vector<8x1024xf32>
    %c1151_i32_3 = arith.constant 1151 : i32
    %30 = tpu.dynamic_rotate %23 by %c1151_i32_3 dim 1 : vector<1x1152xf32>, i32 -> vector<1x1152xf32>
    %31 = vector.extract_strided_slice %30 {offsets = [0, 0], sizes = [1, 1024], strides = [1, 1]} : vector<1x1152xf32> to vector<1x1024xf32>
    %32 = vector.shape_cast %31 : vector<1x1024xf32> to vector<1x1024xf32>
    %33 = vector.broadcast %32 : vector<1x1024xf32> to vector<8x1024xf32>
    %c4_i32 = arith.constant 4 : i32
    %34 = vector.broadcast %c4_i32 : i32 to vector<8x1024xi32>
    %35 = arith.cmpi eq, %0, %34 : vector<8x1024xi32>
    %36 = arith.select %35, %33, %29 : vector<8x1024xi1>, vector<8x1024xf32>
    %c1136_i32 = arith.constant 1136 : i32
    %37 = tpu.dynamic_rotate %30 by %c1136_i32 dim 1 : vector<1x1152xf32>, i32 -> vector<1x1152xf32>
    %38 = vector.extract_strided_slice %37 {offsets = [0, 0], sizes = [1, 1024], strides = [1, 1]} : vector<1x1152xf32> to vector<1x1024xf32>
    %39 = vector.shape_cast %38 : vector<1x1024xf32> to vector<1x1024xf32>
    %40 = vector.broadcast %39 : vector<1x1024xf32> to vector<8x1024xf32>
    %c5_i32 = arith.constant 5 : i32
    %41 = vector.broadcast %c5_i32 : i32 to vector<8x1024xi32>
    %42 = arith.cmpi eq, %0, %41 : vector<8x1024xi32>
    %43 = arith.select %42, %40, %36 : vector<8x1024xi1>, vector<8x1024xf32>
    %c1151_i32_4 = arith.constant 1151 : i32
    %44 = tpu.dynamic_rotate %37 by %c1151_i32_4 dim 1 : vector<1x1152xf32>, i32 -> vector<1x1152xf32>
    %45 = vector.extract_strided_slice %44 {offsets = [0, 0], sizes = [1, 1024], strides = [1, 1]} : vector<1x1152xf32> to vector<1x1024xf32>
    %46 = vector.shape_cast %45 : vector<1x1024xf32> to vector<1x1024xf32>
    %47 = vector.broadcast %46 : vector<1x1024xf32> to vector<8x1024xf32>
    %c6_i32 = arith.constant 6 : i32
    %48 = vector.broadcast %c6_i32 : i32 to vector<8x1024xi32>
    %49 = arith.cmpi eq, %0, %48 : vector<8x1024xi32>
    %50 = arith.select %49, %47, %43 : vector<8x1024xi1>, vector<8x1024xf32>
    %c1151_i32_5 = arith.constant 1151 : i32
    %51 = tpu.dynamic_rotate %44 by %c1151_i32_5 dim 1 : vector<1x1152xf32>, i32 -> vector<1x1152xf32>
    %52 = vector.extract_strided_slice %51 {offsets = [0, 0], sizes = [1, 1024], strides = [1, 1]} : vector<1x1152xf32> to vector<1x1024xf32>
    %53 = vector.shape_cast %52 : vector<1x1024xf32> to vector<1x1024xf32>
    %54 = vector.broadcast %53 : vector<1x1024xf32> to vector<8x1024xf32>
    %c7_i32 = arith.constant 7 : i32
    %55 = vector.broadcast %c7_i32 : i32 to vector<8x1024xi32>
    %56 = arith.cmpi eq, %0, %55 : vector<8x1024xi32>
    %57 = arith.select %56, %54, %50 : vector<8x1024xi1>, vector<8x1024xf32>
    %c0_6 = arith.constant 0 : index
    %c0_7 = arith.constant 0 : index
    %58 = vector.load %arg6[%c0_6, %c0_7] : memref<32x1024xf32, #tpu.memory_space<vmem>>, vector<8x1024xf32>
    tpu.vector_store %arg6[%c0_6, %c0_7], %57 {strides = array<i32>} : memref<32x1024xf32, #tpu.memory_space<vmem>>, vector<8x1024xf32>,
    %cst_8 = arith.constant 0.000000e+00 : f32
    %59 = vector.broadcast %cst_8 : f32 to vector<8x1024xf32>
    %c1151_i32_9 = arith.constant 1151 : i32
    %60 = tpu.dynamic_rotate %51 by %c1151_i32_9 dim 1 : vector<1x1152xf32>, i32 -> vector<1x1152xf32>
    %61 = vector.extract_strided_slice %60 {offsets = [0, 0], sizes = [1, 1024], strides = [1, 1]} : vector<1x1152xf32> to vector<1x1024xf32>
    %62 = vector.shape_cast %61 : vector<1x1024xf32> to vector<1x1024xf32>
    %63 = vector.broadcast %62 : vector<1x1024xf32> to vector<8x1024xf32>
    %c0_i32_10 = arith.constant 0 : i32
    %64 = vector.broadcast %c0_i32_10 : i32 to vector<8x1024xi32>
    %65 = arith.cmpi eq, %0, %64 : vector<8x1024xi32>
    %66 = arith.select %65, %63, %59 : vector<8x1024xi1>, vector<8x1024xf32>
    %c1151_i32_11 = arith.constant 1151 : i32
    %67 = tpu.dynamic_rotate %60 by %c1151_i32_11 dim 1 : vector<1x1152xf32>, i32 -> vector<1x1152xf32>
    %68 = vector.extract_strided_slice %67 {offsets = [0, 0], sizes = [1, 1024], strides = [1, 1]} : vector<1x1152xf32> to vector<1x1024xf32>
    %69 = vector.shape_cast %68 : vector<1x1024xf32> to vector<1x1024xf32>
    %70 = vector.broadcast %69 : vector<1x1024xf32> to vector<8x1024xf32>
    %c1_i32_12 = arith.constant 1 : i32
    %71 = vector.broadcast %c1_i32_12 : i32 to vector<8x1024xi32>
    %72 = arith.cmpi eq, %0, %71 : vector<8x1024xi32>
    %73 = arith.select %72, %70, %66 : vector<8x1024xi1>, vector<8x1024xf32>
    %c1136_i32_13 = arith.constant 1136 : i32
    %74 = tpu.dynamic_rotate %67 by %c1136_i32_13 dim 1 : vector<1x1152xf32>, i32 -> vector<1x1152xf32>
    %75 = vector.extract_strided_slice %74 {offsets = [0, 0], sizes = [1, 1024], strides = [1, 1]} : vector<1x1152xf32> to vector<1x1024xf32>
    %76 = vector.shape_cast %75 : vector<1x1024xf32> to vector<1x1024xf32>
    %77 = vector.broadcast %76 : vector<1x1024xf32> to vector<8x1024xf32>
    %c2_i32_14 = arith.constant 2 : i32
    %78 = vector.broadcast %c2_i32_14 : i32 to vector<8x1024xi32>
    %79 = arith.cmpi eq, %0, %78 : vector<8x1024xi32>
    %80 = arith.select %79, %77, %73 : vector<8x1024xi1>, vector<8x1024xf32>
    %c1151_i32_15 = arith.constant 1151 : i32
    %81 = tpu.dynamic_rotate %74 by %c1151_i32_15 dim 1 : vector<1x1152xf32>, i32 -> vector<1x1152xf32>
    %82 = vector.extract_strided_slice %81 {offsets = [0, 0], sizes = [1, 1024], strides = [1, 1]} : vector<1x1152xf32> to vector<1x1024xf32>
    %83 = vector.shape_cast %82 : vector<1x1024xf32> to vector<1x1024xf32>
    %84 = vector.broadcast %83 : vector<1x1024xf32> to vector<8x1024xf32>
    %c3_i32_16 = arith.constant 3 : i32
    %85 = vector.broadcast %c3_i32_16 : i32 to vector<8x1024xi32>
    %86 = arith.cmpi eq, %0, %85 : vector<8x1024xi32>
    %87 = arith.select %86, %84, %80 : vector<8x1024xi1>, vector<8x1024xf32>
    %c1151_i32_17 = arith.constant 1151 : i32
    %88 = tpu.dynamic_rotate %81 by %c1151_i32_17 dim 1 : vector<1x1152xf32>, i32 -> vector<1x1152xf32>
    %89 = vector.extract_strided_slice %88 {offsets = [0, 0], sizes = [1, 1024], strides = [1, 1]} : vector<1x1152xf32> to vector<1x1024xf32>
    %90 = vector.shape_cast %89 : vector<1x1024xf32> to vector<1x1024xf32>
    %91 = vector.broadcast %90 : vector<1x1024xf32> to vector<8x1024xf32>
    %c4_i32_18 = arith.constant 4 : i32
    %92 = vector.broadcast %c4_i32_18 : i32 to vector<8x1024xi32>
    %93 = arith.cmpi eq, %0, %92 : vector<8x1024xi32>
    %94 = arith.select %93, %91, %87 : vector<8x1024xi1>, vector<8x1024xf32>
    %c1151_i32_19 = arith.constant 1151 : i32
    %95 = tpu.dynamic_rotate %88 by %c1151_i32_19 dim 1 : vector<1x1152xf32>, i32 -> vector<1x1152xf32>
    %96 = vector.extract_strided_slice %95 {offsets = [0, 0], sizes = [1, 1024], strides = [1, 1]} : vector<1x1152xf32> to vector<1x1024xf32>
    %97 = vector.shape_cast %96 : vector<1x1024xf32> to vector<1x1024xf32>
    %98 = vector.broadcast %97 : vector<1x1024xf32> to vector<8x1024xf32>
    %c5_i32_20 = arith.constant 5 : i32
    %99 = vector.broadcast %c5_i32_20 : i32 to vector<8x1024xi32>
    %100 = arith.cmpi eq, %0, %99 : vector<8x1024xi32>
    %101 = arith.select %100, %98, %94 : vector<8x1024xi1>, vector<8x1024xf32>
    %c1151_i32_21 = arith.constant 1151 : i32
    %102 = tpu.dynamic_rotate %95 by %c1151_i32_21 dim 1 : vector<1x1152xf32>, i32 -> vector<1x1152xf32>
    %103 = vector.extract_strided_slice %102 {offsets = [0, 0], sizes = [1, 1024], strides = [1, 1]} : vector<1x1152xf32> to vector<1x1024xf32>
    %104 = vector.shape_cast %103 : vector<1x1024xf32> to vector<1x1024xf32>
    %105 = vector.broadcast %104 : vector<1x1024xf32> to vector<8x1024xf32>
    %c6_i32_22 = arith.constant 6 : i32
    %106 = vector.broadcast %c6_i32_22 : i32 to vector<8x1024xi32>
    %107 = arith.cmpi eq, %0, %106 : vector<8x1024xi32>
    %108 = arith.select %107, %105, %101 : vector<8x1024xi1>, vector<8x1024xf32>
    %c1136_i32_23 = arith.constant 1136 : i32
    %109 = tpu.dynamic_rotate %102 by %c1136_i32_23 dim 1 : vector<1x1152xf32>, i32 -> vector<1x1152xf32>
    %110 = vector.extract_strided_slice %109 {offsets = [0, 0], sizes = [1, 1024], strides = [1, 1]} : vector<1x1152xf32> to vector<1x1024xf32>
    %111 = vector.shape_cast %110 : vector<1x1024xf32> to vector<1x1024xf32>
    %112 = vector.broadcast %111 : vector<1x1024xf32> to vector<8x1024xf32>
    %c7_i32_24 = arith.constant 7 : i32
    %113 = vector.broadcast %c7_i32_24 : i32 to vector<8x1024xi32>
    %114 = arith.cmpi eq, %0, %113 : vector<8x1024xi32>
    %115 = arith.select %114, %112, %108 : vector<8x1024xi1>, vector<8x1024xf32>
    %c8 = arith.constant 8 : index
    %c0_25 = arith.constant 0 : index
    %116 = vector.load %arg6[%c8, %c0_25] : memref<32x1024xf32, #tpu.memory_space<vmem>>, vector<8x1024xf32>
    tpu.vector_store %arg6[%c8, %c0_25], %115 {strides = array<i32>} : memref<32x1024xf32, #tpu.memory_space<vmem>>, vector<8x1024xf32>,
    %cst_26 = arith.constant 0.000000e+00 : f32
    %117 = vector.broadcast %cst_26 : f32 to vector<8x1024xf32>
    %c1151_i32_27 = arith.constant 1151 : i32
    %118 = tpu.dynamic_rotate %109 by %c1151_i32_27 dim 1 : vector<1x1152xf32>, i32 -> vector<1x1152xf32>
    %119 = vector.extract_strided_slice %118 {offsets = [0, 0], sizes = [1, 1024], strides = [1, 1]} : vector<1x1152xf32> to vector<1x1024xf32>
    %120 = vector.shape_cast %119 : vector<1x1024xf32> to vector<1x1024xf32>
    %121 = vector.broadcast %120 : vector<1x1024xf32> to vector<8x1024xf32>
    %c0_i32_28 = arith.constant 0 : i32
    %122 = vector.broadcast %c0_i32_28 : i32 to vector<8x1024xi32>
    %123 = arith.cmpi eq, %0, %122 : vector<8x1024xi32>
    %124 = arith.select %123, %121, %117 : vector<8x1024xi1>, vector<8x1024xf32>
    %c1151_i32_29 = arith.constant 1151 : i32
    %125 = tpu.dynamic_rotate %118 by %c1151_i32_29 dim 1 : vector<1x1152xf32>, i32 -> vector<1x1152xf32>
    %126 = vector.extract_strided_slice %125 {offsets = [0, 0], sizes = [1, 1024], strides = [1, 1]} : vector<1x1152xf32> to vector<1x1024xf32>
    %127 = vector.shape_cast %126 : vector<1x1024xf32> to vector<1x1024xf32>
    %128 = vector.broadcast %127 : vector<1x1024xf32> to vector<8x1024xf32>
    %c1_i32_30 = arith.constant 1 : i32
    %129 = vector.broadcast %c1_i32_30 : i32 to vector<8x1024xi32>
    %130 = arith.cmpi eq, %0, %129 : vector<8x1024xi32>
    %131 = arith.select %130, %128, %124 : vector<8x1024xi1>, vector<8x1024xf32>
    %c1151_i32_31 = arith.constant 1151 : i32
    %132 = tpu.dynamic_rotate %125 by %c1151_i32_31 dim 1 : vector<1x1152xf32>, i32 -> vector<1x1152xf32>
    %133 = vector.extract_strided_slice %132 {offsets = [0, 0], sizes = [1, 1024], strides = [1, 1]} : vector<1x1152xf32> to vector<1x1024xf32>
    %134 = vector.shape_cast %133 : vector<1x1024xf32> to vector<1x1024xf32>
    %135 = vector.broadcast %134 : vector<1x1024xf32> to vector<8x1024xf32>
    %c2_i32_32 = arith.constant 2 : i32
    %136 = vector.broadcast %c2_i32_32 : i32 to vector<8x1024xi32>
    %137 = arith.cmpi eq, %0, %136 : vector<8x1024xi32>
    %138 = arith.select %137, %135, %131 : vector<8x1024xi1>, vector<8x1024xf32>
    %c1151_i32_33 = arith.constant 1151 : i32
    %139 = tpu.dynamic_rotate %132 by %c1151_i32_33 dim 1 : vector<1x1152xf32>, i32 -> vector<1x1152xf32>
    %140 = vector.extract_strided_slice %139 {offsets = [0, 0], sizes = [1, 1024], strides = [1, 1]} : vector<1x1152xf32> to vector<1x1024xf32>
    %141 = vector.shape_cast %140 : vector<1x1024xf32> to vector<1x1024xf32>
    %142 = vector.broadcast %141 : vector<1x1024xf32> to vector<8x1024xf32>
    %c3_i32_34 = arith.constant 3 : i32
    %143 = vector.broadcast %c3_i32_34 : i32 to vector<8x1024xi32>
    %144 = arith.cmpi eq, %0, %143 : vector<8x1024xi32>
    %145 = arith.select %144, %142, %138 : vector<8x1024xi1>, vector<8x1024xf32>
    %c1136_i32_35 = arith.constant 1136 : i32
    %146 = tpu.dynamic_rotate %139 by %c1136_i32_35 dim 1 : vector<1x1152xf32>, i32 -> vector<1x1152xf32>
    %147 = vector.extract_strided_slice %146 {offsets = [0, 0], sizes = [1, 1024], strides = [1, 1]} : vector<1x1152xf32> to vector<1x1024xf32>
    %148 = vector.shape_cast %147 : vector<1x1024xf32> to vector<1x1024xf32>
    %149 = vector.broadcast %148 : vector<1x1024xf32> to vector<8x1024xf32>
    %c4_i32_36 = arith.constant 4 : i32
    %150 = vector.broadcast %c4_i32_36 : i32 to vector<8x1024xi32>
    %151 = arith.cmpi eq, %0, %150 : vector<8x1024xi32>
    %152 = arith.select %151, %149, %145 : vector<8x1024xi1>, vector<8x1024xf32>
    %c1151_i32_37 = arith.constant 1151 : i32
    %153 = tpu.dynamic_rotate %146 by %c1151_i32_37 dim 1 : vector<1x1152xf32>, i32 -> vector<1x1152xf32>
    %154 = vector.extract_strided_slice %153 {offsets = [0, 0], sizes = [1, 1024], strides = [1, 1]} : vector<1x1152xf32> to vector<1x1024xf32>
    %155 = vector.shape_cast %154 : vector<1x1024xf32> to vector<1x1024xf32>
    %156 = vector.broadcast %155 : vector<1x1024xf32> to vector<8x1024xf32>
    %c5_i32_38 = arith.constant 5 : i32
    %157 = vector.broadcast %c5_i32_38 : i32 to vector<8x1024xi32>
    %158 = arith.cmpi eq, %0, %157 : vector<8x1024xi32>
    %159 = arith.select %158, %156, %152 : vector<8x1024xi1>, vector<8x1024xf32>
    %c1151_i32_39 = arith.constant 1151 : i32
    %160 = tpu.dynamic_rotate %153 by %c1151_i32_39 dim 1 : vector<1x1152xf32>, i32 -> vector<1x1152xf32>
    %161 = vector.extract_strided_slice %160 {offsets = [0, 0], sizes = [1, 1024], strides = [1, 1]} : vector<1x1152xf32> to vector<1x1024xf32>
    %162 = vector.shape_cast %161 : vector<1x1024xf32> to vector<1x1024xf32>
    %163 = vector.broadcast %162 : vector<1x1024xf32> to vector<8x1024xf32>
    %c6_i32_40 = arith.constant 6 : i32
    %164 = vector.broadcast %c6_i32_40 : i32 to vector<8x1024xi32>
    %165 = arith.cmpi eq, %0, %164 : vector<8x1024xi32>
    %166 = arith.select %165, %163, %159 : vector<8x1024xi1>, vector<8x1024xf32>
    %c1151_i32_41 = arith.constant 1151 : i32
    %167 = tpu.dynamic_rotate %160 by %c1151_i32_41 dim 1 : vector<1x1152xf32>, i32 -> vector<1x1152xf32>
    %168 = vector.extract_strided_slice %167 {offsets = [0, 0], sizes = [1, 1024], strides = [1, 1]} : vector<1x1152xf32> to vector<1x1024xf32>
    %169 = vector.shape_cast %168 : vector<1x1024xf32> to vector<1x1024xf32>
    %170 = vector.broadcast %169 : vector<1x1024xf32> to vector<8x1024xf32>
    %c7_i32_42 = arith.constant 7 : i32
    %171 = vector.broadcast %c7_i32_42 : i32 to vector<8x1024xi32>
    %172 = arith.cmpi eq, %0, %171 : vector<8x1024xi32>
    %173 = arith.select %172, %170, %166 : vector<8x1024xi1>, vector<8x1024xf32>
    %c16 = arith.constant 16 : index
    %c0_43 = arith.constant 0 : index
    %174 = vector.load %arg6[%c16, %c0_43] : memref<32x1024xf32, #tpu.memory_space<vmem>>, vector<8x1024xf32>
    tpu.vector_store %arg6[%c16, %c0_43], %173 {strides = array<i32>} : memref<32x1024xf32, #tpu.memory_space<vmem>>, vector<8x1024xf32>,
    %cst_44 = arith.constant 0.000000e+00 : f32
    %175 = vector.broadcast %cst_44 : f32 to vector<8x1024xf32>
    %c1151_i32_45 = arith.constant 1151 : i32
    %176 = tpu.dynamic_rotate %167 by %c1151_i32_45 dim 1 : vector<1x1152xf32>, i32 -> vector<1x1152xf32>
    %177 = vector.extract_strided_slice %176 {offsets = [0, 0], sizes = [1, 1024], strides = [1, 1]} : vector<1x1152xf32> to vector<1x1024xf32>
    %178 = vector.shape_cast %177 : vector<1x1024xf32> to vector<1x1024xf32>
    %179 = vector.broadcast %178 : vector<1x1024xf32> to vector<8x1024xf32>
    %c0_i32_46 = arith.constant 0 : i32
    %180 = vector.broadcast %c0_i32_46 : i32 to vector<8x1024xi32>
    %181 = arith.cmpi eq, %0, %180 : vector<8x1024xi32>
    %182 = arith.select %181, %179, %175 : vector<8x1024xi1>, vector<8x1024xf32>
    %c24 = arith.constant 24 : index
    %c0_47 = arith.constant 0 : index
    %183 = vector.load %arg6[%c24, %c0_47] : memref<32x1024xf32, #tpu.memory_space<vmem>>, vector<8x1024xf32>
    tpu.vector_store %arg6[%c24, %c0_47], %182 {strides = array<i32>} : memref<32x1024xf32, #tpu.memory_space<vmem>>, vector<8x1024xf32>,
    %c0_48 = arith.constant 0 : index
    %c0_49 = arith.constant 0 : index
    %184 = vector.load %arg4[%c0_48, %c0_49] : memref<512x256xbf16, #tpu.memory_space<vmem>>, vector<512x256xbf16>
    %c0_50 = arith.constant 0 : index
    %c0_51 = arith.constant 0 : index
    %185 = vector.load %arg6[%c0_50, %c0_51] : memref<32x1024xf32, #tpu.memory_space<vmem>>, vector<32x512xf32>
    %186 = arith.truncf %185 : vector<32x512xf32> to vector<32x512xbf16>
    %cst_52 = arith.constant dense<0.000000e+00> : vector<32x256xf32>
    %187 = tpu.matmul %186, %184, %cst_52 {dimension_numbers = #tpu.dot_dimension_numbers<[1], [0], [0], [1], [0, 0, 1, 1], [], []>} : vector<32x512xbf16>, vector<512x256xbf16>, vector<32x256xf32> -> vector<32x256xf32>
    %188 = arith.truncf %187 : vector<32x256xf32> to vector<32x256xbf16>
    %c0_53 = arith.constant 0 : index
    %c512 = arith.constant 512 : index
    %189 = vector.load %arg6[%c0_53, %c512] : memref<32x1024xf32, #tpu.memory_space<vmem>>, vector<32x512xf32>
    %190 = arith.truncf %189 : vector<32x512xf32> to vector<32x512xbf16>
    %cst_54 = arith.constant dense<0.000000e+00> : vector<32x256xf32>
    %191 = tpu.matmul %190, %184, %cst_54 {dimension_numbers = #tpu.dot_dimension_numbers<[1], [0], [0], [1], [0, 0, 1, 1], [], []>} : vector<32x512xbf16>, vector<512x256xbf16>, vector<32x256xf32> -> vector<32x256xf32>
    %192 = arith.truncf %191 : vector<32x256xf32> to vector<32x256xbf16>
    %193 = tpu.concatenate %188, %192 in 1 : vector<32x256xbf16>, vector<32x256xbf16> -> vector<32x512xbf16>
    %c0_55 = arith.constant 0 : index
    %c0_56 = arith.constant 0 : index
    %194 = vector.load %arg2[%c0_55, %c0_56] : memref<32x32xbf16, #tpu.memory_space<vmem>>, vector<32x32xbf16>
    %cst_57 = arith.constant dense<0.000000e+00> : vector<32x512xf32>
    %195 = tpu.matmul %194, %193, %cst_57 {dimension_numbers = #tpu.dot_dimension_numbers<[1], [0], [0], [1], [0, 0, 1, 1], [], []>} : vector<32x32xbf16>, vector<32x512xbf16>, vector<32x512xf32> -> vector<32x512xf32>
    %cst_58 = arith.constant -5.000000e+00 : f32
    %cst_59 = arith.constant 5.000000e+00 : f32
    %196 = vector.broadcast %cst_58 : f32 to vector<32x512xf32>
    %197 = arith.maximumf %196, %195 : vector<32x512xf32>
    %198 = vector.broadcast %cst_59 : f32 to vector<32x512xf32>
    %199 = arith.minimumf %198, %197 : vector<32x512xf32>
    %c0_60 = arith.constant 0 : index
    %c0_61 = arith.constant 0 : index
    %200 = vector.load %arg3[%c0_60, %c0_61] : memref<32x1xf32, #tpu.memory_space<vmem>>, vector<32x1xf32>
    %201 = vector.broadcast %200 : vector<32x1xf32> to vector<32x512xf32>
    %202 = arith.mulf %199, %201 : vector<32x512xf32>
    %203 = vector.extract_strided_slice %202 {offsets = [0, 0], sizes = [30, 256], strides = [1, 1]} : vector<32x512xf32> to vector<30x256xf32>
    %c0_62 = arith.constant 0 : index
    %c0_63 = arith.constant 0 : index
    %c0_64 = arith.constant 0 : index
    %204 = vector.load %arg5[%c0_62, %c0_63, %c0_64] : memref<2x30x256xf32, #tpu.memory_space<vmem>>, vector<1x30x256xf32>
    %205 = vector.shape_cast %204 : vector<1x30x256xf32> to vector<30x256xf32>
    %206 = vector.shape_cast %203 : vector<30x256xf32> to vector<1x30x256xf32>
    tpu.vector_store %arg5[%c0_62, %c0_63, %c0_64], %206 {strides = array<i32>} : memref<2x30x256xf32, #tpu.memory_space<vmem>>, vector<1x30x256xf32>,
    %207 = vector.extract_strided_slice %202 {offsets = [0, 256], sizes = [30, 256], strides = [1, 1]} : vector<32x512xf32> to vector<30x256xf32>
    %c1 = arith.constant 1 : index
    %c0_65 = arith.constant 0 : index
    %c0_66 = arith.constant 0 : index
    %208 = vector.load %arg5[%c1, %c0_65, %c0_66] : memref<2x30x256xf32, #tpu.memory_space<vmem>>, vector<1x30x256xf32>
    %209 = vector.shape_cast %208 : vector<1x30x256xf32> to vector<30x256xf32>
    %210 = vector.shape_cast %207 : vector<30x256xf32> to vector<1x30x256xf32>
    tpu.vector_store %arg5[%c1, %c0_65, %c0_66], %210 {strides = array<i32>} : memref<2x30x256xf32, #tpu.memory_space<vmem>>, vector<1x30x256xf32>,
    return
  }
  func.func @transform_0(%arg0: i32) -> (i32, i32) {
    %c0_i32 = arith.constant 0 : i32
    %c0_i32_0 = arith.constant 0 : i32
    return %arg0, %c0_i32 : i32, i32
  }
  func.func @transform_1(%arg0: i32) -> (i32, i32) {
    %c0_i32 = arith.constant 0 : i32
    %c0_i32_0 = arith.constant 0 : i32
    %c0_i32_1 = arith.constant 0 : i32
    return %c0_i32, %c0_i32_0 : i32, i32
  }
  func.func @transform_2(%arg0: i32) -> (i32, i32) {
    %c0_i32 = arith.constant 0 : i32
    %c0_i32_0 = arith.constant 0 : i32
    %c0_i32_1 = arith.constant 0 : i32
    return %c0_i32, %c0_i32_0 : i32, i32
  }
  func.func @transform_3(%arg0: i32) -> (i32, i32) {
    %c0_i32 = arith.constant 0 : i32
    %c0_i32_0 = arith.constant 0 : i32
    %c0_i32_1 = arith.constant 0 : i32
    return %c0_i32, %c0_i32_0 : i32, i32
  }
  func.func @transform_4(%arg0: i32) -> (i32, i32, i32) {
    %c0_i32 = arith.constant 0 : i32
    %c0_i32_0 = arith.constant 0 : i32
    %c0_i32_1 = arith.constant 0 : i32
    return %arg0, %c0_i32, %c0_i32_0 : i32, i32, i32
  }
}

</mosaic_0001>

<llo_original>
// kernel: tpu_custom_call.1
$region0: #{tpu_custom_call.1}
  #allocation0 [shape = 'u32[]', space=smem, size = 0x4, offset = 0x4, fixed_abs, tag = 'smem constant byte address 0x4 - core index']
  #allocation1 [shape = 'u32[144,128]{1,0:T(1,128)}', space=vmem, size = 0x12000, scoped, tag = 'internal scratch']
  #allocation2 [shape = 'f32[32,1024]{1,0:T(8,128)}', space=vmem, size = 0x20000, scoped, tag = 'scratch operand']
  %s0 = inlined_call_operand.vmem [shape: f32[1,1152], index: 0, kind: input, shape index: {}]
  %s1 = inlined_call_operand.vmem [shape: bf16[32,32], index: 1, kind: input, shape index: {}]
  %s2 = inlined_call_operand.vmem [shape: f32[32,1], index: 2, kind: input, shape index: {}]
  %s3 = inlined_call_operand.hbm [shape: bf16[512,256], index: 3, kind: input, shape index: {}]
  %s4 = inlined_call_operand.vmem [shape: f32[2,30,256], index: 4, kind: output, shape index: {}]
  %s5 = sld [smem:[#allocation0]]
  $region30: #{tpu_custom_call.1} parent=0
    _
  %s7 = ssub.s32 1, %s5
  %s8 = scalar_select 0, %s7, %s5
  $region1: #{tpu_custom_call.1} parent=0
    #allocation3 [shape = 'u8[262144]{0}', space=vmem, size = 0x40000, scoped, tag = 'input window, operand 3, single buffered']
    #allocation4 [shape = 's32[1]{0}', space=sflag, size = 0x4, scoped, tag = 'scoped memory for tpu_custom_call.1']
    %9 = vsyncpa [#allocation4], 0
    // Predicated region
    $region2: #{tpu_custom_call.1} parent=1 // pred_check
      _
    $region3: #{tpu_custom_call.1} parent=1 // pred_check_branch
      %11 = sbr.rel (0) target = $region5
    $region4: #{tpu_custom_call.1} parent=1 // pred_region
      _
    $region5: #{tpu_custom_call.1} parent=1 // pred_fallthru
      _
    // Predicated region
    $region6: #{tpu_custom_call.1} parent=1 // pred_check
      _
    $region7: #{tpu_custom_call.1} parent=1 // pred_check_branch
      %13 = sbr.rel (0) target = $region9
    $region8: #{tpu_custom_call.1} parent=1 // pred_region
      _
    $region9: #{tpu_custom_call.1} parent=1 // pred_fallthru
      _
    // Predicated region
    $region10: #{tpu_custom_call.1} parent=1 // pred_check
      _
    $region11: #{tpu_custom_call.1} parent=1 // pred_check_branch
      %15 = sbr.rel (0) target = $region13
    $region12: #{tpu_custom_call.1} parent=1 // pred_region
      _
    $region13: #{tpu_custom_call.1} parent=1 // pred_fallthru
      _
    // Predicated region
    $region14: #{tpu_custom_call.1} parent=1 // pred_check
      _
    $region15: #{tpu_custom_call.1} parent=1 // pred_check_branch
      %17 = sbr.rel (0) target = $region17
    $region16: #{tpu_custom_call.1} parent=1 // pred_region
      %s19 = ssub.s32 8192, 8192
      %20 = vsyncadd [#allocation4], %s19
      %s21 = sshll.u32 [#allocation3], 4
      %s22 = int_to_ptr.vmem [resolvable:$true] %s21
      %27 = dma.hbm_to_vmem [thread:$0]  %s3, 8192, %s22, [#allocation4], 128, 128, 8
    $region17: #{tpu_custom_call.1} parent=1 // pred_fallthru
      _
    // Predicated region
    $region18: #{tpu_custom_call.1} parent=1 // pred_check
      _
    $region19: #{tpu_custom_call.1} parent=1 // pred_check_branch
      %29 = sbr.rel (0) target = $region21
    $region20: #{tpu_custom_call.1} parent=1 // pred_region
      %30 = dma.done [#allocation4], 8192
    $region21: #{tpu_custom_call.1} parent=1 // pred_fallthru
      _
    %v32 = vlaneseq
    %v33 = vshrl.u32 %v32, 7
    %v34 = vld [vmem:[%s0] sm:$0xff]
    %v35 = vld [vmem:[%s0 + $0x8] sm:$0x1]
    %v37 = vlaneseq
    %v38 = vshrl.u32 %v37, 7
    %v39 = vsub.s32 0, %v38
    %v40 = vrot.slane %v34, %v39
    %v41 = vlaneseq
    %v42 = vshrl.u32 %v41, 7
    %v43 = vsub.s32 1, %v42
    %v44 = vrot.slane %v34, %v43
    %v45 = vlaneseq
    %v46 = vshrl.u32 %v45, 7
    %v47 = vsub.s32 2, %v46
    %v48 = vrot.slane %v34, %v47
    %v49 = vlaneseq
    %v50 = vshrl.u32 %v49, 7
    %v51 = vsub.s32 3, %v50
    %v52 = vrot.slane %v34, %v51
    %v53 = vlaneseq
    %v54 = vshrl.u32 %v53, 7
    %v55 = vsub.s32 4, %v54
    %v56 = vrot.slane %v34, %v55
    %v57 = vlaneseq
    %v58 = vshrl.u32 %v57, 7
    %v59 = vsub.s32 5, %v58
    %v60 = vrot.slane %v34, %v59
    %v61 = vlaneseq
    %v62 = vshrl.u32 %v61, 7
    %v63 = vsub.s32 6, %v62
    %v64 = vrot.slane %v34, %v63
    %v65 = vlaneseq
    %v66 = vshrl.u32 %v65, 7
    %v67 = vsub.s32 7, %v66
    %v68 = vrot.slane %v34, %v67
    %vm77 = vcmp.eq.s32.totalorder %v33, 0
    %v78 = vsel %vm77, %v40, 0.0
    %v79 = vsel %vm77, %v44, 0.0
    %v80 = vsel %vm77, %v48, 0.0
    %v81 = vsel %vm77, %v52, 0.0
    %v82 = vsel %vm77, %v56, 0.0
    %v83 = vsel %vm77, %v60, 0.0
    %v84 = vsel %vm77, %v64, 0.0
    %v85 = vsel %vm77, %v68, 0.0
    %v87 = vlaneseq
    %v88 = vshrl.u32 %v87, 7
    %v89 = vsub.s32 0, %v88
    %v90 = vrot.slane %v35, %v89
    %92 = vrot.lane.b32.xlu0 %v40, 127
    %v93 = vpop.permute.xlu0 %92
    %94 = vrot.lane.b32.xlu0 %v44, 127
    %v95 = vpop.permute.xlu0 %94
    %96 = vrot.lane.b32.xlu0 %v48, 127
    %v97 = vpop.permute.xlu0 %96
    %98 = vrot.lane.b32.xlu0 %v52, 127
    %v99 = vpop.permute.xlu0 %98
    %100 = vrot.lane.b32.xlu0 %v56, 127
    %v101 = vpop.permute.xlu0 %100
    %102 = vrot.lane.b32.xlu0 %v60, 127
    %v103 = vpop.permute.xlu0 %102
    %104 = vrot.lane.b32.xlu0 %v64, 127
    %v105 = vpop.permute.xlu0 %104
    %106 = vrot.lane.b32.xlu0 %v68, 127
    %v107 = vpop.permute.xlu0 %106
    %108 = vrot.lane.b32.xlu0 %v90, 127
    %v109 = vpop.permute.xlu0 %108
    %v110 = vlaneseq
    %v111 = vand.u32 %v110, 127
    %vm112 = vcmp.lt.s32.totalorder %v111, 127
    %v113 = vsel %vm112, %v107, %v109
    %v114 = vsel %vm112, %v105, %v107
    %v115 = vsel %vm112, %v103, %v105
    %v116 = vsel %vm112, %v101, %v103
    %v117 = vsel %vm112, %v99, %v101
    %v118 = vsel %vm112, %v97, %v99
    %v119 = vsel %vm112, %v95, %v97
    %v120 = vsel %vm112, %v93, %v95
    %v121 = vsel %vm112, %v109, %v93
    %v122 = vlaneseq
    %v123 = vshrl.u32 %v122, 7
    %v124 = vsub.s32 0, %v123
    %v125 = vrot.slane %v120, %v124
    %v126 = vlaneseq
    %v127 = vshrl.u32 %v126, 7
    %v128 = vsub.s32 0, %v127
    %v129 = vrot.slane %v119, %v128
    %v130 = vlaneseq
    %v131 = vshrl.u32 %v130, 7
    %v132 = vsub.s32 0, %v131
    %v133 = vrot.slane %v118, %v132
    %v134 = vlaneseq
    %v135 = vshrl.u32 %v134, 7
    %v136 = vsub.s32 0, %v135
    %v137 = vrot.slane %v117, %v136
    %v138 = vlaneseq
    %v139 = vshrl.u32 %v138, 7
    %v140 = vsub.s32 0, %v139
    %v141 = vrot.slane %v116, %v140
    %v142 = vlaneseq
    %v143 = vshrl.u32 %v142, 7
    %v144 = vsub.s32 0, %v143
    %v145 = vrot.slane %v115, %v144
    %v146 = vlaneseq
    %v147 = vshrl.u32 %v146, 7
    %v148 = vsub.s32 0, %v147
    %v149 = vrot.slane %v114, %v148
    %v150 = vlaneseq
    %v151 = vshrl.u32 %v150, 7
    %v152 = vsub.s32 0, %v151
    %v153 = vrot.slane %v113, %v152
    %vm154 = vcmp.eq.s32.totalorder %v33, 1
    %v155 = vsel %vm154, %v125, %v78
    %v156 = vsel %vm154, %v129, %v79
    %v157 = vsel %vm154, %v133, %v80
    %v158 = vsel %vm154, %v137, %v81
    %v159 = vsel %vm154, %v141, %v82
    %v160 = vsel %vm154, %v145, %v83
    %v161 = vsel %vm154, %v149, %v84
    %v162 = vsel %vm154, %v153, %v85
    %163 = vrot.lane.b32.xlu0 %v120, 127
    %v164 = vpop.permute.xlu0 %163
    %165 = vrot.lane.b32.xlu0 %v119, 127
    %v166 = vpop.permute.xlu0 %165
    %167 = vrot.lane.b32.xlu0 %v118, 127
    %v168 = vpop.permute.xlu0 %167
    %169 = vrot.lane.b32.xlu0 %v117, 127
    %v170 = vpop.permute.xlu0 %169
    %171 = vrot.lane.b32.xlu0 %v116, 127
    %v172 = vpop.permute.xlu0 %171
    %173 = vrot.lane.b32.xlu0 %v115, 127
    %v174 = vpop.permute.xlu0 %173
    %175 = vrot.lane.b32.xlu0 %v114, 127
    %v176 = vpop.permute.xlu0 %175
    %177 = vrot.lane.b32.xlu0 %v113, 127
    %v178 = vpop.permute.xlu0 %177
    %179 = vrot.lane.b32.xlu0 %v121, 127
    %v180 = vpop.permute.xlu0 %179
    %v181 = vsel %vm112, %v178, %v180
    %v182 = vsel %vm112, %v176, %v178
    %v183 = vsel %vm112, %v174, %v176
    %v184 = vsel %vm112, %v172, %v174
    %v185 = vsel %vm112, %v170, %v172
    %v186 = vsel %vm112, %v168, %v170
    %v187 = vsel %vm112, %v166, %v168
    %v188 = vsel %vm112, %v164, %v166
    %v189 = vsel %vm112, %v180, %v164
    %v190 = vlaneseq
    %v191 = vshrl.u32 %v190, 7
    %v192 = vsub.s32 0, %v191
    %v193 = vrot.slane %v188, %v192
    %v194 = vlaneseq
    %v195 = vshrl.u32 %v194, 7
    %v196 = vsub.s32 0, %v195
    %v197 = vrot.slane %v187, %v196
    %v198 = vlaneseq
    %v199 = vshrl.u32 %v198, 7
    %v200 = vsub.s32 0, %v199
    %v201 = vrot.slane %v186, %v200
    %v202 = vlaneseq
    %v203 = vshrl.u32 %v202, 7
    %v204 = vsub.s32 0, %v203
    %v205 = vrot.slane %v185, %v204
    %v206 = vlaneseq
    %v207 = vshrl.u32 %v206, 7
    %v208 = vsub.s32 0, %v207
    %v209 = vrot.slane %v184, %v208
    %v210 = vlaneseq
    %v211 = vshrl.u32 %v210, 7
    %v212 = vsub.s32 0, %v211
    %v213 = vrot.slane %v183, %v212
    %v214 = vlaneseq
    %v215 = vshrl.u32 %v214, 7
    %v216 = vsub.s32 0, %v215
    %v217 = vrot.slane %v182, %v216
    %v218 = vlaneseq
    %v219 = vshrl.u32 %v218, 7
    %v220 = vsub.s32 0, %v219
    %v221 = vrot.slane %v181, %v220
    %vm222 = vcmp.eq.s32.totalorder %v33, 2
    %v223 = vsel %vm222, %v193, %v155
    %v224 = vsel %vm222, %v197, %v156
    %v225 = vsel %vm222, %v201, %v157
    %v226 = vsel %vm222, %v205, %v158
    %v227 = vsel %vm222, %v209, %v159
    %v228 = vsel %vm222, %v213, %v160
    %v229 = vsel %vm222, %v217, %v161
    %v230 = vsel %vm222, %v221, %v162
    %231 = vrot.lane.b32.xlu0 %v188, 127
    %v232 = vpop.permute.xlu0 %231
    %233 = vrot.lane.b32.xlu0 %v187, 127
    %v234 = vpop.permute.xlu0 %233
    %235 = vrot.lane.b32.xlu0 %v186, 127
    %v236 = vpop.permute.xlu0 %235
    %237 = vrot.lane.b32.xlu0 %v185, 127
    %v238 = vpop.permute.xlu0 %237
    %239 = vrot.lane.b32.xlu0 %v184, 127
    %v240 = vpop.permute.xlu0 %239
    %241 = vrot.lane.b32.xlu0 %v183, 127
    %v242 = vpop.permute.xlu0 %241
    %243 = vrot.lane.b32.xlu0 %v182, 127
    %v244 = vpop.permute.xlu0 %243
    %245 = vrot.lane.b32.xlu0 %v181, 127
    %v246 = vpop.permute.xlu0 %245
    %247 = vrot.lane.b32.xlu0 %v189, 127
    %v248 = vpop.permute.xlu0 %247
    %v249 = vsel %vm112, %v246, %v248
    %v250 = vsel %vm112, %v244, %v246
    %v251 = vsel %vm112, %v242, %v244
    %v252 = vsel %vm112, %v240, %v242
    %v253 = vsel %vm112, %v238, %v240
    %v254 = vsel %vm112, %v236, %v238
    %v255 = vsel %vm112, %v234, %v236
    %v256 = vsel %vm112, %v232, %v234
    %v257 = vsel %vm112, %v248, %v232
    %v258 = vlaneseq
    %v259 = vshrl.u32 %v258, 7
    %v260 = vsub.s32 0, %v259
    %v261 = vrot.slane %v256, %v260
    %v262 = vlaneseq
    %v263 = vshrl.u32 %v262, 7
    %v264 = vsub.s32 0, %v263
    %v265 = vrot.slane %v255, %v264
    %v266 = vlaneseq
    %v267 = vshrl.u32 %v266, 7
    %v268 = vsub.s32 0, %v267
    %v269 = vrot.slane %v254, %v268
    %v270 = vlaneseq
    %v271 = vshrl.u32 %v270, 7
    %v272 = vsub.s32 0, %v271
    %v273 = vrot.slane %v253, %v272
    %v274 = vlaneseq
    %v275 = vshrl.u32 %v274, 7
    %v276 = vsub.s32 0, %v275
    %v277 = vrot.slane %v252, %v276
    %v278 = vlaneseq
    %v279 = vshrl.u32 %v278, 7
    %v280 = vsub.s32 0, %v279
    %v281 = vrot.slane %v251, %v280
    %v282 = vlaneseq
    %v283 = vshrl.u32 %v282, 7
    %v284 = vsub.s32 0, %v283
    %v285 = vrot.slane %v250, %v284
    %v286 = vlaneseq
    %v287 = vshrl.u32 %v286, 7
    %v288 = vsub.s32 0, %v287
    %v289 = vrot.slane %v249, %v288
    %vm290 = vcmp.eq.s32.totalorder %v33, 3
    %v291 = vsel %vm290, %v261, %v223
    %v292 = vsel %vm290, %v265, %v224
    %v293 = vsel %vm290, %v269, %v225
    %v294 = vsel %vm290, %v273, %v226
    %v295 = vsel %vm290, %v277, %v227
    %v296 = vsel %vm290, %v281, %v228
    %v297 = vsel %vm290, %v285, %v229
    %v298 = vsel %vm290, %v289, %v230
    %299 = vrot.lane.b32.xlu0 %v256, 127
    %v300 = vpop.permute.xlu0 %299
    %301 = vrot.lane.b32.xlu0 %v255, 127
    %v302 = vpop.permute.xlu0 %301
    %303 = vrot.lane.b32.xlu0 %v254, 127
    %v304 = vpop.permute.xlu0 %303
    %305 = vrot.lane.b32.xlu0 %v253, 127
    %v306 = vpop.permute.xlu0 %305
    %307 = vrot.lane.b32.xlu0 %v252, 127
    %v308 = vpop.permute.xlu0 %307
    %309 = vrot.lane.b32.xlu0 %v251, 127
    %v310 = vpop.permute.xlu0 %309
    %311 = vrot.lane.b32.xlu0 %v250, 127
    %v312 = vpop.permute.xlu0 %311
    %313 = vrot.lane.b32.xlu0 %v249, 127
    %v314 = vpop.permute.xlu0 %313
    %315 = vrot.lane.b32.xlu0 %v257, 127
    %v316 = vpop.permute.xlu0 %315
    %v317 = vsel %vm112, %v314, %v316
    %v318 = vsel %vm112, %v312, %v314
    %v319 = vsel %vm112, %v310, %v312
    %v320 = vsel %vm112, %v308, %v310
    %v321 = vsel %vm112, %v306, %v308
    %v322 = vsel %vm112, %v304, %v306
    %v323 = vsel %vm112, %v302, %v304
    %v324 = vsel %vm112, %v300, %v302
    %v325 = vsel %vm112, %v316, %v300
    %v326 = vlaneseq
    %v327 = vshrl.u32 %v326, 7
    %v328 = vsub.s32 0, %v327
    %v329 = vrot.slane %v324, %v328
    %v330 = vlaneseq
    %v331 = vshrl.u32 %v330, 7
    %v332 = vsub.s32 0, %v331
    %v333 = vrot.slane %v323, %v332
    %v334 = vlaneseq
    %v335 = vshrl.u32 %v334, 7
    %v336 = vsub.s32 0, %v335
    %v337 = vrot.slane %v322, %v336
    %v338 = vlaneseq
    %v339 = vshrl.u32 %v338, 7
    %v340 = vsub.s32 0, %v339
    %v341 = vrot.slane %v321, %v340
    %v342 = vlaneseq
    %v343 = vshrl.u32 %v342, 7
    %v344 = vsub.s32 0, %v343
    %v345 = vrot.slane %v320, %v344
    %v346 = vlaneseq
    %v347 = vshrl.u32 %v346, 7
    %v348 = vsub.s32 0, %v347
    %v349 = vrot.slane %v319, %v348
    %v350 = vlaneseq
    %v351 = vshrl.u32 %v350, 7
    %v352 = vsub.s32 0, %v351
    %v353 = vrot.slane %v318, %v352
    %v354 = vlaneseq
    %v355 = vshrl.u32 %v354, 7
    %v356 = vsub.s32 0, %v355
    %v357 = vrot.slane %v317, %v356
    %vm358 = vcmp.eq.s32.totalorder %v33, 4
    %v359 = vsel %vm358, %v329, %v291
    %v360 = vsel %vm358, %v333, %v292
    %v361 = vsel %vm358, %v337, %v293
    %v362 = vsel %vm358, %v341, %v294
    %v363 = vsel %vm358, %v345, %v295
    %v364 = vsel %vm358, %v349, %v296
    %v365 = vsel %vm358, %v353, %v297
    %v366 = vsel %vm358, %v357, %v298
    %367 = vrot.lane.b32.xlu0 %v324, 112
    %v368 = vpop.permute.xlu0 %367
    %369 = vrot.lane.b32.xlu0 %v323, 112
    %v370 = vpop.permute.xlu0 %369
    %371 = vrot.lane.b32.xlu0 %v322, 112
    %v372 = vpop.permute.xlu0 %371
    %373 = vrot.lane.b32.xlu0 %v321, 112
    %v374 = vpop.permute.xlu0 %373
    %375 = vrot.lane.b32.xlu0 %v320, 112
    %v376 = vpop.permute.xlu0 %375
    %377 = vrot.lane.b32.xlu0 %v319, 112
    %v378 = vpop.permute.xlu0 %377
    %379 = vrot.lane.b32.xlu0 %v318, 112
    %v380 = vpop.permute.xlu0 %379
    %381 = vrot.lane.b32.xlu0 %v317, 112
    %v382 = vpop.permute.xlu0 %381
    %383 = vrot.lane.b32.xlu0 %v325, 112
    %v384 = vpop.permute.xlu0 %383
    %vm385 = vcmp.lt.s32.totalorder %v111, 112
    %v386 = vsel %vm385, %v382, %v384
    %v387 = vsel %vm385, %v380, %v382
    %v388 = vsel %vm385, %v378, %v380
    %v389 = vsel %vm385, %v376, %v378
    %v390 = vsel %vm385, %v374, %v376
    %v391 = vsel %vm385, %v372, %v374
    %v392 = vsel %vm385, %v370, %v372
    %v393 = vsel %vm385, %v368, %v370
    %v394 = vsel %vm385, %v384, %v368
    %v395 = vlaneseq
    %v396 = vshrl.u32 %v395, 7
    %v397 = vsub.s32 0, %v396
    %v398 = vrot.slane %v393, %v397
    %v399 = vlaneseq
    %v400 = vshrl.u32 %v399, 7
    %v401 = vsub.s32 0, %v400
    %v402 = vrot.slane %v392, %v401
    %v403 = vlaneseq
    %v404 = vshrl.u32 %v403, 7
    %v405 = vsub.s32 0, %v404
    %v406 = vrot.slane %v391, %v405
    %v407 = vlaneseq
    %v408 = vshrl.u32 %v407, 7
    %v409 = vsub.s32 0, %v408
    %v410 = vrot.slane %v390, %v409
    %v411 = vlaneseq
    %v412 = vshrl.u32 %v411, 7
    %v413 = vsub.s32 0, %v412
    %v414 = vrot.slane %v389, %v413
    %v415 = vlaneseq
    %v416 = vshrl.u32 %v415, 7
    %v417 = vsub.s32 0, %v416
    %v418 = vrot.slane %v388, %v417
    %v419 = vlaneseq
    %v420 = vshrl.u32 %v419, 7
    %v421 = vsub.s32 0, %v420
    %v422 = vrot.slane %v387, %v421
    %v423 = vlaneseq
    %v424 = vshrl.u32 %v423, 7
    %v425 = vsub.s32 0, %v424
    %v426 = vrot.slane %v386, %v425
    %vm427 = vcmp.eq.s32.totalorder %v33, 5
    %v428 = vsel %vm427, %v398, %v359
    %v429 = vsel %vm427, %v402, %v360
    %v430 = vsel %vm427, %v406, %v361
    %v431 = vsel %vm427, %v410, %v362
    %v432 = vsel %vm427, %v414, %v363
    %v433 = vsel %vm427, %v418, %v364
    %v434 = vsel %vm427, %v422, %v365
    %v435 = vsel %vm427, %v426, %v366
    %436 = vrot.lane.b32.xlu0 %v393, 127
    %v437 = vpop.permute.xlu0 %436
    %438 = vrot.lane.b32.xlu0 %v392, 127
    %v439 = vpop.permute.xlu0 %438
    %440 = vrot.lane.b32.xlu0 %v391, 127
    %v441 = vpop.permute.xlu0 %440
    %442 = vrot.lane.b32.xlu0 %v390, 127
    %v443 = vpop.permute.xlu0 %442
    %444 = vrot.lane.b32.xlu0 %v389, 127
    %v445 = vpop.permute.xlu0 %444
    %446 = vrot.lane.b32.xlu0 %v388, 127
    %v447 = vpop.permute.xlu0 %446
    %448 = vrot.lane.b32.xlu0 %v387, 127
    %v449 = vpop.permute.xlu0 %448
    %450 = vrot.lane.b32.xlu0 %v386, 127
    %v451 = vpop.permute.xlu0 %450
    %452 = vrot.lane.b32.xlu0 %v394, 127
    %v453 = vpop.permute.xlu0 %452
    %v454 = vsel %vm112, %v451, %v453
    %v455 = vsel %vm112, %v449, %v451
    %v456 = vsel %vm112, %v447, %v449
    %v457 = vsel %vm112, %v445, %v447
    %v458 = vsel %vm112, %v443, %v445
    %v459 = vsel %vm112, %v441, %v443
    %v460 = vsel %vm112, %v439, %v441
    %v461 = vsel %vm112, %v437, %v439
    %v462 = vsel %vm112, %v453, %v437
    %v463 = vlaneseq
    %v464 = vshrl.u32 %v463, 7
    %v465 = vsub.s32 0, %v464
    %v466 = vrot.slane %v461, %v465
    %v467 = vlaneseq
    %v468 = vshrl.u32 %v467, 7
    %v469 = vsub.s32 0, %v468
    %v470 = vrot.slane %v460, %v469
    %v471 = vlaneseq
    %v472 = vshrl.u32 %v471, 7
    %v473 = vsub.s32 0, %v472
    %v474 = vrot.slane %v459, %v473
    %v475 = vlaneseq
    %v476 = vshrl.u32 %v475, 7
    %v477 = vsub.s32 0, %v476
    %v478 = vrot.slane %v458, %v477
    %v479 = vlaneseq
    %v480 = vshrl.u32 %v479, 7
    %v481 = vsub.s32 0, %v480
    %v482 = vrot.slane %v457, %v481
    %v483 = vlaneseq
    %v484 = vshrl.u32 %v483, 7
    %v485 = vsub.s32 0, %v484
    %v486 = vrot.slane %v456, %v485
    %v487 = vlaneseq
    %v488 = vshrl.u32 %v487, 7
    %v489 = vsub.s32 0, %v488
    %v490 = vrot.slane %v455, %v489
    %v491 = vlaneseq
    %v492 = vshrl.u32 %v491, 7
    %v493 = vsub.s32 0, %v492
    %v494 = vrot.slane %v454, %v493
    %vm495 = vcmp.eq.s32.totalorder %v33, 6
    %v496 = vsel %vm495, %v466, %v428
    %v497 = vsel %vm495, %v470, %v429
    %v498 = vsel %vm495, %v474, %v430
    %v499 = vsel %vm495, %v478, %v431
    %v500 = vsel %vm495, %v482, %v432
    %v501 = vsel %vm495, %v486, %v433
    %v502 = vsel %vm495, %v490, %v434
    %v503 = vsel %vm495, %v494, %v435
    %504 = vrot.lane.b32.xlu0 %v461, 127
    %v505 = vpop.permute.xlu0 %504
    %506 = vrot.lane.b32.xlu0 %v460, 127
    %v507 = vpop.permute.xlu0 %506
    %508 = vrot.lane.b32.xlu0 %v459, 127
    %v509 = vpop.permute.xlu0 %508
    %510 = vrot.lane.b32.xlu0 %v458, 127
    %v511 = vpop.permute.xlu0 %510
    %512 = vrot.lane.b32.xlu0 %v457, 127
    %v513 = vpop.permute.xlu0 %512
    %514 = vrot.lane.b32.xlu0 %v456, 127
    %v515 = vpop.permute.xlu0 %514
    %516 = vrot.lane.b32.xlu0 %v455, 127
    %v517 = vpop.permute.xlu0 %516
    %518 = vrot.lane.b32.xlu0 %v454, 127
    %v519 = vpop.permute.xlu0 %518
    %520 = vrot.lane.b32.xlu0 %v462, 127
    %v521 = vpop.permute.xlu0 %520
    %v522 = vsel %vm112, %v519, %v521
    %v523 = vsel %vm112, %v517, %v519
    %v524 = vsel %vm112, %v515, %v517
    %v525 = vsel %vm112, %v513, %v515
    %v526 = vsel %vm112, %v511, %v513
    %v527 = vsel %vm112, %v509, %v511
    %v528 = vsel %vm112, %v507, %v509
    %v529 = vsel %vm112, %v505, %v507
    %v530 = vsel %vm112, %v521, %v505
    %v531 = vlaneseq
    %v532 = vshrl.u32 %v531, 7
    %v533 = vsub.s32 0, %v532
    %v534 = vrot.slane %v529, %v533
    %v535 = vlaneseq
    %v536 = vshrl.u32 %v535, 7
    %v537 = vsub.s32 0, %v536
    %v538 = vrot.slane %v528, %v537
    %v539 = vlaneseq
    %v540 = vshrl.u32 %v539, 7
    %v541 = vsub.s32 0, %v540
    %v542 = vrot.slane %v527, %v541
    %v543 = vlaneseq
    %v544 = vshrl.u32 %v543, 7
    %v545 = vsub.s32 0, %v544
    %v546 = vrot.slane %v526, %v545
    %v547 = vlaneseq
    %v548 = vshrl.u32 %v547, 7
    %v549 = vsub.s32 0, %v548
    %v550 = vrot.slane %v525, %v549
    %v551 = vlaneseq
    %v552 = vshrl.u32 %v551, 7
    %v553 = vsub.s32 0, %v552
    %v554 = vrot.slane %v524, %v553
    %v555 = vlaneseq
    %v556 = vshrl.u32 %v555, 7
    %v557 = vsub.s32 0, %v556
    %v558 = vrot.slane %v523, %v557
    %v559 = vlaneseq
    %v560 = vshrl.u32 %v559, 7
    %v561 = vsub.s32 0, %v560
    %v562 = vrot.slane %v522, %v561
    %vm563 = vcmp.eq.s32.totalorder %v33, 7
    %v564 = vsel %vm563, %v534, %v496
    %v565 = vsel %vm563, %v538, %v497
    %v566 = vsel %vm563, %v542, %v498
    %v567 = vsel %vm563, %v546, %v499
    %v568 = vsel %vm563, %v550, %v500
    %v569 = vsel %vm563, %v554, %v501
    %v570 = vsel %vm563, %v558, %v502
    %v571 = vsel %vm563, %v562, %v503
    %572 = vst [vmem:[#allocation2] sm:$0xff] %v564
    %573 = vst [vmem:[#allocation2 + $0x8] sm:$0xff] %v565
    %574 = vst [vmem:[#allocation2 + $0x10] sm:$0xff] %v566
    %575 = vst [vmem:[#allocation2 + $0x18] sm:$0xff] %v567
    %576 = vst [vmem:[#allocation2 + $0x20] sm:$0xff] %v568
    %577 = vst [vmem:[#allocation2 + $0x28] sm:$0xff] %v569
    %578 = vst [vmem:[#allocation2 + $0x30] sm:$0xff] %v570
    %579 = vst [vmem:[#allocation2 + $0x38] sm:$0xff] %v571
    %580 = vrot.lane.b32.xlu0 %v529, 127
    %v581 = vpop.permute.xlu0 %580
    %582 = vrot.lane.b32.xlu0 %v528, 127
    %v583 = vpop.permute.xlu0 %582
    %584 = vrot.lane.b32.xlu0 %v527, 127
    %v585 = vpop.permute.xlu0 %584
    %586 = vrot.lane.b32.xlu0 %v526, 127
    %v587 = vpop.permute.xlu0 %586
    %588 = vrot.lane.b32.xlu0 %v525, 127
    %v589 = vpop.permute.xlu0 %588
    %590 = vrot.lane.b32.xlu0 %v524, 127
    %v591 = vpop.permute.xlu0 %590
    %592 = vrot.lane.b32.xlu0 %v523, 127
    %v593 = vpop.permute.xlu0 %592
    %594 = vrot.lane.b32.xlu0 %v522, 127
    %v595 = vpop.permute.xlu0 %594
    %596 = vrot.lane.b32.xlu0 %v530, 127
    %v597 = vpop.permute.xlu0 %596
    %v598 = vsel %vm112, %v595, %v597
    %v599 = vsel %vm112, %v593, %v595
    %v600 = vsel %vm112, %v591, %v593
    %v601 = vsel %vm112, %v589, %v591
    %v602 = vsel %vm112, %v587, %v589
    %v603 = vsel %vm112, %v585, %v587
    %v604 = vsel %vm112, %v583, %v585
    %v605 = vsel %vm112, %v581, %v583
    %v606 = vsel %vm112, %v597, %v581
    %v607 = vlaneseq
    %v608 = vshrl.u32 %v607, 7
    %v609 = vsub.s32 0, %v608
    %v610 = vrot.slane %v605, %v609
    %v611 = vlaneseq
    %v612 = vshrl.u32 %v611, 7
    %v613 = vsub.s32 0, %v612
    %v614 = vrot.slane %v604, %v613
    %v615 = vlaneseq
    %v616 = vshrl.u32 %v615, 7
    %v617 = vsub.s32 0, %v616
    %v618 = vrot.slane %v603, %v617
    %v619 = vlaneseq
    %v620 = vshrl.u32 %v619, 7
    %v621 = vsub.s32 0, %v620
    %v622 = vrot.slane %v602, %v621
    %v623 = vlaneseq
    %v624 = vshrl.u32 %v623, 7
    %v625 = vsub.s32 0, %v624
    %v626 = vrot.slane %v601, %v625
    %v627 = vlaneseq
    %v628 = vshrl.u32 %v627, 7
    %v629 = vsub.s32 0, %v628
    %v630 = vrot.slane %v600, %v629
    %v631 = vlaneseq
    %v632 = vshrl.u32 %v631, 7
    %v633 = vsub.s32 0, %v632
    %v634 = vrot.slane %v599, %v633
    %v635 = vlaneseq
    %v636 = vshrl.u32 %v635, 7
    %v637 = vsub.s32 0, %v636
    %v638 = vrot.slane %v598, %v637
    %v639 = vsel %vm77, %v610, 0.0
    %v640 = vsel %vm77, %v614, 0.0
    %v641 = vsel %vm77, %v618, 0.0
    %v642 = vsel %vm77, %v622, 0.0
    %v643 = vsel %vm77, %v626, 0.0
    %v644 = vsel %vm77, %v630, 0.0
    %v645 = vsel %vm77, %v634, 0.0
    %v646 = vsel %vm77, %v638, 0.0
    %647 = vrot.lane.b32.xlu0 %v605, 127
    %v648 = vpop.permute.xlu0 %647
    %649 = vrot.lane.b32.xlu0 %v604, 127
    %v650 = vpop.permute.xlu0 %649
    %651 = vrot.lane.b32.xlu0 %v603, 127
    %v652 = vpop.permute.xlu0 %651
    %653 = vrot.lane.b32.xlu0 %v602, 127
    %v654 = vpop.permute.xlu0 %653
    %655 = vrot.lane.b32.xlu0 %v601, 127
    %v656 = vpop.permute.xlu0 %655
    %657 = vrot.lane.b32.xlu0 %v600, 127
    %v658 = vpop.permute.xlu0 %657
    %659 = vrot.lane.b32.xlu0 %v599, 127
    %v660 = vpop.permute.xlu0 %659
    %661 = vrot.lane.b32.xlu0 %v598, 127
    %v662 = vpop.permute.xlu0 %661
    %663 = vrot.lane.b32.xlu0 %v606, 127
    %v664 = vpop.permute.xlu0 %663
    %v665 = vsel %vm112, %v662, %v664
    %v666 = vsel %vm112, %v660, %v662
    %v667 = vsel %vm112, %v658, %v660
    %v668 = vsel %vm112, %v656, %v658
    %v669 = vsel %vm112, %v654, %v656
    %v670 = vsel %vm112, %v652, %v654
    %v671 = vsel %vm112, %v650, %v652
    %v672 = vsel %vm112, %v648, %v650
    %v673 = vsel %vm112, %v664, %v648
    %v674 = vlaneseq
    %v675 = vshrl.u32 %v674, 7
    %v676 = vsub.s32 0, %v675
    %v677 = vrot.slane %v672, %v676
    %v678 = vlaneseq
    %v679 = vshrl.u32 %v678, 7
    %v680 = vsub.s32 0, %v679
    %v681 = vrot.slane %v671, %v680
    %v682 = vlaneseq
    %v683 = vshrl.u32 %v682, 7
    %v684 = vsub.s32 0, %v683
    %v685 = vrot.slane %v670, %v684
    %v686 = vlaneseq
    %v687 = vshrl.u32 %v686, 7
    %v688 = vsub.s32 0, %v687
    %v689 = vrot.slane %v669, %v688
    %v690 = vlaneseq
    %v691 = vshrl.u32 %v690, 7
    %v692 = vsub.s32 0, %v691
    %v693 = vrot.slane %v668, %v692
    %v694 = vlaneseq
    %v695 = vshrl.u32 %v694, 7
    %v696 = vsub.s32 0, %v695
    %v697 = vrot.slane %v667, %v696
    %v698 = vlaneseq
    %v699 = vshrl.u32 %v698, 7
    %v700 = vsub.s32 0, %v699
    %v701 = vrot.slane %v666, %v700
    %v702 = vlaneseq
    %v703 = vshrl.u32 %v702, 7
    %v704 = vsub.s32 0, %v703
    %v705 = vrot.slane %v665, %v704
    %v706 = vsel %vm154, %v677, %v639
    %v707 = vsel %vm154, %v681, %v640
    %v708 = vsel %vm154, %v685, %v641
    %v709 = vsel %vm154, %v689, %v642
    %v710 = vsel %vm154, %v693, %v643
    %v711 = vsel %vm154, %v697, %v644
    %v712 = vsel %vm154, %v701, %v645
    %v713 = vsel %vm154, %v705, %v646
    %714 = vrot.lane.b32.xlu0 %v672, 112
    %v715 = vpop.permute.xlu0 %714
    %716 = vrot.lane.b32.xlu0 %v671, 112
    %v717 = vpop.permute.xlu0 %716
    %718 = vrot.lane.b32.xlu0 %v670, 112
    %v719 = vpop.permute.xlu0 %718
    %720 = vrot.lane.b32.xlu0 %v669, 112
    %v721 = vpop.permute.xlu0 %720
    %722 = vrot.lane.b32.xlu0 %v668, 112
    %v723 = vpop.permute.xlu0 %722
    %724 = vrot.lane.b32.xlu0 %v667, 112
    %v725 = vpop.permute.xlu0 %724
    %726 = vrot.lane.b32.xlu0 %v666, 112
    %v727 = vpop.permute.xlu0 %726
    %728 = vrot.lane.b32.xlu0 %v665, 112
    %v729 = vpop.permute.xlu0 %728
    %730 = vrot.lane.b32.xlu0 %v673, 112
    %v731 = vpop.permute.xlu0 %730
    %v732 = vsel %vm385, %v729, %v731
    %v733 = vsel %vm385, %v727, %v729
    %v734 = vsel %vm385, %v725, %v727
    %v735 = vsel %vm385, %v723, %v725
    %v736 = vsel %vm385, %v721, %v723
    %v737 = vsel %vm385, %v719, %v721
    %v738 = vsel %vm385, %v717, %v719
    %v739 = vsel %vm385, %v715, %v717
    %v740 = vsel %vm385, %v731, %v715
    %v741 = vlaneseq
    %v742 = vshrl.u32 %v741, 7
    %v743 = vsub.s32 0, %v742
    %v744 = vrot.slane %v739, %v743
    %v745 = vlaneseq
    %v746 = vshrl.u32 %v745, 7
    %v747 = vsub.s32 0, %v746
    %v748 = vrot.slane %v738, %v747
    %v749 = vlaneseq
    %v750 = vshrl.u32 %v749, 7
    %v751 = vsub.s32 0, %v750
    %v752 = vrot.slane %v737, %v751
    %v753 = vlaneseq
    %v754 = vshrl.u32 %v753, 7
    %v755 = vsub.s32 0, %v754
    %v756 = vrot.slane %v736, %v755
    %v757 = vlaneseq
    %v758 = vshrl.u32 %v757, 7
    %v759 = vsub.s32 0, %v758
    %v760 = vrot.slane %v735, %v759
    %v761 = vlaneseq
    %v762 = vshrl.u32 %v761, 7
    %v763 = vsub.s32 0, %v762
    %v764 = vrot.slane %v734, %v763
    %v765 = vlaneseq
    %v766 = vshrl.u32 %v765, 7
    %v767 = vsub.s32 0, %v766
    %v768 = vrot.slane %v733, %v767
    %v769 = vlaneseq
    %v770 = vshrl.u32 %v769, 7
    %v771 = vsub.s32 0, %v770
    %v772 = vrot.slane %v732, %v771
    %v773 = vsel %vm222, %v744, %v706
    %v774 = vsel %vm222, %v748, %v707
    %v775 = vsel %vm222, %v752, %v708
    %v776 = vsel %vm222, %v756, %v709
    %v777 = vsel %vm222, %v760, %v710
    %v778 = vsel %vm222, %v764, %v711
    %v779 = vsel %vm222, %v768, %v712
    %v780 = vsel %vm222, %v772, %v713
    %781 = vrot.lane.b32.xlu0 %v739, 127
    %v782 = vpop.permute.xlu0 %781
    %783 = vrot.lane.b32.xlu0 %v738, 127
    %v784 = vpop.permute.xlu0 %783
    %785 = vrot.lane.b32.xlu0 %v737, 127
    %v786 = vpop.permute.xlu0 %785
    %787 = vrot.lane.b32.xlu0 %v736, 127
    %v788 = vpop.permute.xlu0 %787
    %789 = vrot.lane.b32.xlu0 %v735, 127
    %v790 = vpop.permute.xlu0 %789
    %791 = vrot.lane.b32.xlu0 %v734, 127
    %v792 = vpop.permute.xlu0 %791
    %793 = vrot.lane.b32.xlu0 %v733, 127
    %v794 = vpop.permute.xlu0 %793
    %795 = vrot.lane.b32.xlu0 %v732, 127
    %v796 = vpop.permute.xlu0 %795
    %797 = vrot.lane.b32.xlu0 %v740, 127
    %v798 = vpop.permute.xlu0 %797
    %v799 = vsel %vm112, %v796, %v798
    %v800 = vsel %vm112, %v794, %v796
    %v801 = vsel %vm112, %v792, %v794
    %v802 = vsel %vm112, %v790, %v792
    %v803 = vsel %vm112, %v788, %v790
    %v804 = vsel %vm112, %v786, %v788
    %v805 = vsel %vm112, %v784, %v786
    %v806 = vsel %vm112, %v782, %v784
    %v807 = vsel %vm112, %v798, %v782
    %v808 = vlaneseq
    %v809 = vshrl.u32 %v808, 7
    %v810 = vsub.s32 0, %v809
    %v811 = vrot.slane %v806, %v810
    %v812 = vlaneseq
    %v813 = vshrl.u32 %v812, 7
    %v814 = vsub.s32 0, %v813
    %v815 = vrot.slane %v805, %v814
    %v816 = vlaneseq
    %v817 = vshrl.u32 %v816, 7
    %v818 = vsub.s32 0, %v817
    %v819 = vrot.slane %v804, %v818
    %v820 = vlaneseq
    %v821 = vshrl.u32 %v820, 7
    %v822 = vsub.s32 0, %v821
    %v823 = vrot.slane %v803, %v822
    %v824 = vlaneseq
    %v825 = vshrl.u32 %v824, 7
    %v826 = vsub.s32 0, %v825
    %v827 = vrot.slane %v802, %v826
    %v828 = vlaneseq
    %v829 = vshrl.u32 %v828, 7
    %v830 = vsub.s32 0, %v829
    %v831 = vrot.slane %v801, %v830
    %v832 = vlaneseq
    %v833 = vshrl.u32 %v832, 7
    %v834 = vsub.s32 0, %v833
    %v835 = vrot.slane %v800, %v834
    %v836 = vlaneseq
    %v837 = vshrl.u32 %v836, 7
    %v838 = vsub.s32 0, %v837
    %v839 = vrot.slane %v799, %v838
    %v840 = vsel %vm290, %v811, %v773
    %v841 = vsel %vm290, %v815, %v774
    %v842 = vsel %vm290, %v819, %v775
    %v843 = vsel %vm290, %v823, %v776
    %v844 = vsel %vm290, %v827, %v777
    %v845 = vsel %vm290, %v831, %v778
    %v846 = vsel %vm290, %v835, %v779
    %v847 = vsel %vm290, %v839, %v780
    %848 = vrot.lane.b32.xlu0 %v806, 127
    %v849 = vpop.permute.xlu0 %848
    %850 = vrot.lane.b32.xlu0 %v805, 127
    %v851 = vpop.permute.xlu0 %850
    %852 = vrot.lane.b32.xlu0 %v804, 127
    %v853 = vpop.permute.xlu0 %852
    %854 = vrot.lane.b32.xlu0 %v803, 127
    %v855 = vpop.permute.xlu0 %854
    %856 = vrot.lane.b32.xlu0 %v802, 127
    %v857 = vpop.permute.xlu0 %856
    %858 = vrot.lane.b32.xlu0 %v801, 127
    %v859 = vpop.permute.xlu0 %858
    %860 = vrot.lane.b32.xlu0 %v800, 127
    %v861 = vpop.permute.xlu0 %860
    %862 = vrot.lane.b32.xlu0 %v799, 127
    %v863 = vpop.permute.xlu0 %862
    %864 = vrot.lane.b32.xlu0 %v807, 127
    %v865 = vpop.permute.xlu0 %864
    %v866 = vsel %vm112, %v863, %v865
    %v867 = vsel %vm112, %v861, %v863
    %v868 = vsel %vm112, %v859, %v861
    %v869 = vsel %vm112, %v857, %v859
    %v870 = vsel %vm112, %v855, %v857
    %v871 = vsel %vm112, %v853, %v855
    %v872 = vsel %vm112, %v851, %v853
    %v873 = vsel %vm112, %v849, %v851
    %v874 = vsel %vm112, %v865, %v849
    %v875 = vlaneseq
    %v876 = vshrl.u32 %v875, 7
    %v877 = vsub.s32 0, %v876
    %v878 = vrot.slane %v873, %v877
    %v879 = vlaneseq
    %v880 = vshrl.u32 %v879, 7
    %v881 = vsub.s32 0, %v880
    %v882 = vrot.slane %v872, %v881
    %v883 = vlaneseq
    %v884 = vshrl.u32 %v883, 7
    %v885 = vsub.s32 0, %v884
    %v886 = vrot.slane %v871, %v885
    %v887 = vlaneseq
    %v888 = vshrl.u32 %v887, 7
    %v889 = vsub.s32 0, %v888
    %v890 = vrot.slane %v870, %v889
    %v891 = vlaneseq
    %v892 = vshrl.u32 %v891, 7
    %v893 = vsub.s32 0, %v892
    %v894 = vrot.slane %v869, %v893
    %v895 = vlaneseq
    %v896 = vshrl.u32 %v895, 7
    %v897 = vsub.s32 0, %v896
    %v898 = vrot.slane %v868, %v897
    %v899 = vlaneseq
    %v900 = vshrl.u32 %v899, 7
    %v901 = vsub.s32 0, %v900
    %v902 = vrot.slane %v867, %v901
    %v903 = vlaneseq
    %v904 = vshrl.u32 %v903, 7
    %v905 = vsub.s32 0, %v904
    %v906 = vrot.slane %v866, %v905
    %v907 = vsel %vm358, %v878, %v840
    %v908 = vsel %vm358, %v882, %v841
    %v909 = vsel %vm358, %v886, %v842
    %v910 = vsel %vm358, %v890, %v843
    %v911 = vsel %vm358, %v894, %v844
    %v912 = vsel %vm358, %v898, %v845
    %v913 = vsel %vm358, %v902, %v846
    %v914 = vsel %vm358, %v906, %v847
    %915 = vrot.lane.b32.xlu0 %v873, 127
    %v916 = vpop.permute.xlu0 %915
    %917 = vrot.lane.b32.xlu0 %v872, 127
    %v918 = vpop.permute.xlu0 %917
    %919 = vrot.lane.b32.xlu0 %v871, 127
    %v920 = vpop.permute.xlu0 %919
    %921 = vrot.lane.b32.xlu0 %v870, 127
    %v922 = vpop.permute.xlu0 %921
    %923 = vrot.lane.b32.xlu0 %v869, 127
    %v924 = vpop.permute.xlu0 %923
    %925 = vrot.lane.b32.xlu0 %v868, 127
    %v926 = vpop.permute.xlu0 %925
    %927 = vrot.lane.b32.xlu0 %v867, 127
    %v928 = vpop.permute.xlu0 %927
    %929 = vrot.lane.b32.xlu0 %v866, 127
    %v930 = vpop.permute.xlu0 %929
    %931 = vrot.lane.b32.xlu0 %v874, 127
    %v932 = vpop.permute.xlu0 %931
    %v933 = vsel %vm112, %v930, %v932
    %v934 = vsel %vm112, %v928, %v930
    %v935 = vsel %vm112, %v926, %v928
    %v936 = vsel %vm112, %v924, %v926
    %v937 = vsel %vm112, %v922, %v924
    %v938 = vsel %vm112, %v920, %v922
    %v939 = vsel %vm112, %v918, %v920
    %v940 = vsel %vm112, %v916, %v918
    %v941 = vsel %vm112, %v932, %v916
    %v942 = vlaneseq
    %v943 = vshrl.u32 %v942, 7
    %v944 = vsub.s32 0, %v943
    %v945 = vrot.slane %v940, %v944
    %v946 = vlaneseq
    %v947 = vshrl.u32 %v946, 7
    %v948 = vsub.s32 0, %v947
    %v949 = vrot.slane %v939, %v948
    %v950 = vlaneseq
    %v951 = vshrl.u32 %v950, 7
    %v952 = vsub.s32 0, %v951
    %v953 = vrot.slane %v938, %v952
    %v954 = vlaneseq
    %v955 = vshrl.u32 %v954, 7
    %v956 = vsub.s32 0, %v955
    %v957 = vrot.slane %v937, %v956
    %v958 = vlaneseq
    %v959 = vshrl.u32 %v958, 7
    %v960 = vsub.s32 0, %v959
    %v961 = vrot.slane %v936, %v960
    %v962 = vlaneseq
    %v963 = vshrl.u32 %v962, 7
    %v964 = vsub.s32 0, %v963
    %v965 = vrot.slane %v935, %v964
    %v966 = vlaneseq
    %v967 = vshrl.u32 %v966, 7
    %v968 = vsub.s32 0, %v967
    %v969 = vrot.slane %v934, %v968
    %v970 = vlaneseq
    %v971 = vshrl.u32 %v970, 7
    %v972 = vsub.s32 0, %v971
    %v973 = vrot.slane %v933, %v972
    %v974 = vsel %vm427, %v945, %v907
    %v975 = vsel %vm427, %v949, %v908
    %v976 = vsel %vm427, %v953, %v909
    %v977 = vsel %vm427, %v957, %v910
    %v978 = vsel %vm427, %v961, %v911
    %v979 = vsel %vm427, %v965, %v912
    %v980 = vsel %vm427, %v969, %v913
    %v981 = vsel %vm427, %v973, %v914
    %982 = vrot.lane.b32.xlu0 %v940, 127
    %v983 = vpop.permute.xlu0 %982
    %984 = vrot.lane.b32.xlu0 %v939, 127
    %v985 = vpop.permute.xlu0 %984
    %986 = vrot.lane.b32.xlu0 %v938, 127
    %v987 = vpop.permute.xlu0 %986
    %988 = vrot.lane.b32.xlu0 %v937, 127
    %v989 = vpop.permute.xlu0 %988
    %990 = vrot.lane.b32.xlu0 %v936, 127
    %v991 = vpop.permute.xlu0 %990
    %992 = vrot.lane.b32.xlu0 %v935, 127
    %v993 = vpop.permute.xlu0 %992
    %994 = vrot.lane.b32.xlu0 %v934, 127
    %v995 = vpop.permute.xlu0 %994
    %996 = vrot.lane.b32.xlu0 %v933, 127
    %v997 = vpop.permute.xlu0 %996
    %998 = vrot.lane.b32.xlu0 %v941, 127
    %v999 = vpop.permute.xlu0 %998
    %v1000 = vsel %vm112, %v997, %v999
    %v1001 = vsel %vm112, %v995, %v997
    %v1002 = vsel %vm112, %v993, %v995
    %v1003 = vsel %vm112, %v991, %v993
    %v1004 = vsel %vm112, %v989, %v991
    %v1005 = vsel %vm112, %v987, %v989
    %v1006 = vsel %vm112, %v985, %v987
    %v1007 = vsel %vm112, %v983, %v985
    %v1008 = vsel %vm112, %v999, %v983
    %v1009 = vlaneseq
    %v1010 = vshrl.u32 %v1009, 7
    %v1011 = vsub.s32 0, %v1010
    %v1012 = vrot.slane %v1007, %v1011
    %v1013 = vlaneseq
    %v1014 = vshrl.u32 %v1013, 7
    %v1015 = vsub.s32 0, %v1014
    %v1016 = vrot.slane %v1006, %v1015
    %v1017 = vlaneseq
    %v1018 = vshrl.u32 %v1017, 7
    %v1019 = vsub.s32 0, %v1018
    %v1020 = vrot.slane %v1005, %v1019
    %v1021 = vlaneseq
    %v1022 = vshrl.u32 %v1021, 7
    %v1023 = vsub.s32 0, %v1022
    %v1024 = vrot.slane %v1004, %v1023
    %v1025 = vlaneseq
    %v1026 = vshrl.u32 %v1025, 7
    %v1027 = vsub.s32 0, %v1026
    %v1028 = vrot.slane %v1003, %v1027
    %v1029 = vlaneseq
    %v1030 = vshrl.u32 %v1029, 7
    %v1031 = vsub.s32 0, %v1030
    %v1032 = vrot.slane %v1002, %v1031
    %v1033 = vlaneseq
    %v1034 = vshrl.u32 %v1033, 7
    %v1035 = vsub.s32 0, %v1034
    %v1036 = vrot.slane %v1001, %v1035
    %v1037 = vlaneseq
    %v1038 = vshrl.u32 %v1037, 7
    %v1039 = vsub.s32 0, %v1038
    %v1040 = vrot.slane %v1000, %v1039
    %v1041 = vsel %vm495, %v1012, %v974
    %v1042 = vsel %vm495, %v1016, %v975
    %v1043 = vsel %vm495, %v1020, %v976
    %v1044 = vsel %vm495, %v1024, %v977
    %v1045 = vsel %vm495, %v1028, %v978
    %v1046 = vsel %vm495, %v1032, %v979
    %v1047 = vsel %vm495, %v1036, %v980
    %v1048 = vsel %vm495, %v1040, %v981
    %1049 = vrot.lane.b32.xlu0 %v1007, 112
    %v1050 = vpop.permute.xlu0 %1049
    %1051 = vrot.lane.b32.xlu0 %v1006, 112
    %v1052 = vpop.permute.xlu0 %1051
    %1053 = vrot.lane.b32.xlu0 %v1005, 112
    %v1054 = vpop.permute.xlu0 %1053
    %1055 = vrot.lane.b32.xlu0 %v1004, 112
    %v1056 = vpop.permute.xlu0 %1055
    %1057 = vrot.lane.b32.xlu0 %v1003, 112
    %v1058 = vpop.permute.xlu0 %1057
    %1059 = vrot.lane.b32.xlu0 %v1002, 112
    %v1060 = vpop.permute.xlu0 %1059
    %1061 = vrot.lane.b32.xlu0 %v1001, 112
    %v1062 = vpop.permute.xlu0 %1061
    %1063 = vrot.lane.b32.xlu0 %v1000, 112
    %v1064 = vpop.permute.xlu0 %1063
    %1065 = vrot.lane.b32.xlu0 %v1008, 112
    %v1066 = vpop.permute.xlu0 %1065
    %v1067 = vsel %vm385, %v1064, %v1066
    %v1068 = vsel %vm385, %v1062, %v1064
    %v1069 = vsel %vm385, %v1060, %v1062
    %v1070 = vsel %vm385, %v1058, %v1060
    %v1071 = vsel %vm385, %v1056, %v1058
    %v1072 = vsel %vm385, %v1054, %v1056
    %v1073 = vsel %vm385, %v1052, %v1054
    %v1074 = vsel %vm385, %v1050, %v1052
    %v1075 = vsel %vm385, %v1066, %v1050
    %v1076 = vlaneseq
    %v1077 = vshrl.u32 %v1076, 7
    %v1078 = vsub.s32 0, %v1077
    %v1079 = vrot.slane %v1074, %v1078
    %v1080 = vlaneseq
    %v1081 = vshrl.u32 %v1080, 7
    %v1082 = vsub.s32 0, %v1081
    %v1083 = vrot.slane %v1073, %v1082
    %v1084 = vlaneseq
    %v1085 = vshrl.u32 %v1084, 7
    %v1086 = vsub.s32 0, %v1085
    %v1087 = vrot.slane %v1072, %v1086
    %v1088 = vlaneseq
    %v1089 = vshrl.u32 %v1088, 7
    %v1090 = vsub.s32 0, %v1089
    %v1091 = vrot.slane %v1071, %v1090
    %v1092 = vlaneseq
    %v1093 = vshrl.u32 %v1092, 7
    %v1094 = vsub.s32 0, %v1093
    %v1095 = vrot.slane %v1070, %v1094
    %v1096 = vlaneseq
    %v1097 = vshrl.u32 %v1096, 7
    %v1098 = vsub.s32 0, %v1097
    %v1099 = vrot.slane %v1069, %v1098
    %v1100 = vlaneseq
    %v1101 = vshrl.u32 %v1100, 7
    %v1102 = vsub.s32 0, %v1101
    %v1103 = vrot.slane %v1068, %v1102
    %v1104 = vlaneseq
    %v1105 = vshrl.u32 %v1104, 7
    %v1106 = vsub.s32 0, %v1105
    %v1107 = vrot.slane %v1067, %v1106
    %v1108 = vsel %vm563, %v1079, %v1041
    %v1109 = vsel %vm563, %v1083, %v1042
    %v1110 = vsel %vm563, %v1087, %v1043
    %v1111 = vsel %vm563, %v1091, %v1044
    %v1112 = vsel %vm563, %v1095, %v1045
    %v1113 = vsel %vm563, %v1099, %v1046
    %v1114 = vsel %vm563, %v1103, %v1047
    %v1115 = vsel %vm563, %v1107, %v1048
    %1116 = vst [vmem:[#allocation2 + $0x40] sm:$0xff] %v1108
    %1117 = vst [vmem:[#allocation2 + $0x48] sm:$0xff] %v1109
    %1118 = vst [vmem:[#allocation2 + $0x50] sm:$0xff] %v1110
    %1119 = vst [vmem:[#allocation2 + $0x58] sm:$0xff] %v1111
    %1120 = vst [vmem:[#allocation2 + $0x60] sm:$0xff] %v1112
    %1121 = vst [vmem:[#allocation2 + $0x68] sm:$0xff] %v1113
    %1122 = vst [vmem:[#allocation2 + $0x70] sm:$0xff] %v1114
    %1123 = vst [vmem:[#allocation2 + $0x78] sm:$0xff] %v1115
    %1124 = vrot.lane.b32.xlu0 %v1074, 127
    %v1125 = vpop.permute.xlu0 %1124
    %1126 = vrot.lane.b32.xlu0 %v1073, 127
    %v1127 = vpop.permute.xlu0 %1126
    %1128 = vrot.lane.b32.xlu0 %v1072, 127
    %v1129 = vpop.permute.xlu0 %1128
    %1130 = vrot.lane.b32.xlu0 %v1071, 127
    %v1131 = vpop.permute.xlu0 %1130
    %1132 = vrot.lane.b32.xlu0 %v1070, 127
    %v1133 = vpop.permute.xlu0 %1132
    %1134 = vrot.lane.b32.xlu0 %v1069, 127
    %v1135 = vpop.permute.xlu0 %1134
    %1136 = vrot.lane.b32.xlu0 %v1068, 127
    %v1137 = vpop.permute.xlu0 %1136
    %1138 = vrot.lane.b32.xlu0 %v1067, 127
    %v1139 = vpop.permute.xlu0 %1138
    %1140 = vrot.lane.b32.xlu0 %v1075, 127
    %v1141 = vpop.permute.xlu0 %1140
    %v1142 = vsel %vm112, %v1139, %v1141
    %v1143 = vsel %vm112, %v1137, %v1139
    %v1144 = vsel %vm112, %v1135, %v1137
    %v1145 = vsel %vm112, %v1133, %v1135
    %v1146 = vsel %vm112, %v1131, %v1133
    %v1147 = vsel %vm112, %v1129, %v1131
    %v1148 = vsel %vm112, %v1127, %v1129
    %v1149 = vsel %vm112, %v1125, %v1127
    %v1150 = vsel %vm112, %v1141, %v1125
    %v1151 = vlaneseq
    %v1152 = vshrl.u32 %v1151, 7
    %v1153 = vsub.s32 0, %v1152
    %v1154 = vrot.slane %v1149, %v1153
    %v1155 = vlaneseq
    %v1156 = vshrl.u32 %v1155, 7
    %v1157 = vsub.s32 0, %v1156
    %v1158 = vrot.slane %v1148, %v1157
    %v1159 = vlaneseq
    %v1160 = vshrl.u32 %v1159, 7
    %v1161 = vsub.s32 0, %v1160
    %v1162 = vrot.slane %v1147, %v1161
    %v1163 = vlaneseq
    %v1164 = vshrl.u32 %v1163, 7
    %v1165 = vsub.s32 0, %v1164
    %v1166 = vrot.slane %v1146, %v1165
    %v1167 = vlaneseq
    %v1168 = vshrl.u32 %v1167, 7
    %v1169 = vsub.s32 0, %v1168
    %v1170 = vrot.slane %v1145, %v1169
    %v1171 = vlaneseq
    %v1172 = vshrl.u32 %v1171, 7
    %v1173 = vsub.s32 0, %v1172
    %v1174 = vrot.slane %v1144, %v1173
    %v1175 = vlaneseq
    %v1176 = vshrl.u32 %v1175, 7
    %v1177 = vsub.s32 0, %v1176
    %v1178 = vrot.slane %v1143, %v1177
    %v1179 = vlaneseq
    %v1180 = vshrl.u32 %v1179, 7
    %v1181 = vsub.s32 0, %v1180
    %v1182 = vrot.slane %v1142, %v1181
    %v1183 = vsel %vm77, %v1154, 0.0
    %v1184 = vsel %vm77, %v1158, 0.0
    %v1185 = vsel %vm77, %v1162, 0.0
    %v1186 = vsel %vm77, %v1166, 0.0
    %v1187 = vsel %vm77, %v1170, 0.0
    %v1188 = vsel %vm77, %v1174, 0.0
    %v1189 = vsel %vm77, %v1178, 0.0
    %v1190 = vsel %vm77, %v1182, 0.0
    %1191 = vrot.lane.b32.xlu0 %v1149, 127
    %v1192 = vpop.permute.xlu0 %1191
    %1193 = vrot.lane.b32.xlu0 %v1148, 127
    %v1194 = vpop.permute.xlu0 %1193
    %1195 = vrot.lane.b32.xlu0 %v1147, 127
    %v1196 = vpop.permute.xlu0 %1195
    %1197 = vrot.lane.b32.xlu0 %v1146, 127
    %v1198 = vpop.permute.xlu0 %1197
    %1199 = vrot.lane.b32.xlu0 %v1145, 127
    %v1200 = vpop.permute.xlu0 %1199
    %1201 = vrot.lane.b32.xlu0 %v1144, 127
    %v1202 = vpop.permute.xlu0 %1201
    %1203 = vrot.lane.b32.xlu0 %v1143, 127
    %v1204 = vpop.permute.xlu0 %1203
    %1205 = vrot.lane.b32.xlu0 %v1142, 127
    %v1206 = vpop.permute.xlu0 %1205
    %1207 = vrot.lane.b32.xlu0 %v1150, 127
    %v1208 = vpop.permute.xlu0 %1207
    %v1209 = vsel %vm112, %v1206, %v1208
    %v1210 = vsel %vm112, %v1204, %v1206
    %v1211 = vsel %vm112, %v1202, %v1204
    %v1212 = vsel %vm112, %v1200, %v1202
    %v1213 = vsel %vm112, %v1198, %v1200
    %v1214 = vsel %vm112, %v1196, %v1198
    %v1215 = vsel %vm112, %v1194, %v1196
    %v1216 = vsel %vm112, %v1192, %v1194
    %v1217 = vsel %vm112, %v1208, %v1192
    %v1218 = vlaneseq
    %v1219 = vshrl.u32 %v1218, 7
    %v1220 = vsub.s32 0, %v1219
    %v1221 = vrot.slane %v1216, %v1220
    %v1222 = vlaneseq
    %v1223 = vshrl.u32 %v1222, 7
    %v1224 = vsub.s32 0, %v1223
    %v1225 = vrot.slane %v1215, %v1224
    %v1226 = vlaneseq
    %v1227 = vshrl.u32 %v1226, 7
    %v1228 = vsub.s32 0, %v1227
    %v1229 = vrot.slane %v1214, %v1228
    %v1230 = vlaneseq
    %v1231 = vshrl.u32 %v1230, 7
    %v1232 = vsub.s32 0, %v1231
    %v1233 = vrot.slane %v1213, %v1232
    %v1234 = vlaneseq
    %v1235 = vshrl.u32 %v1234, 7
    %v1236 = vsub.s32 0, %v1235
    %v1237 = vrot.slane %v1212, %v1236
    %v1238 = vlaneseq
    %v1239 = vshrl.u32 %v1238, 7
    %v1240 = vsub.s32 0, %v1239
    %v1241 = vrot.slane %v1211, %v1240
    %v1242 = vlaneseq
    %v1243 = vshrl.u32 %v1242, 7
    %v1244 = vsub.s32 0, %v1243
    %v1245 = vrot.slane %v1210, %v1244
    %v1246 = vlaneseq
    %v1247 = vshrl.u32 %v1246, 7
    %v1248 = vsub.s32 0, %v1247
    %v1249 = vrot.slane %v1209, %v1248
    %v1250 = vsel %vm154, %v1221, %v1183
    %v1251 = vsel %vm154, %v1225, %v1184
    %v1252 = vsel %vm154, %v1229, %v1185
    %v1253 = vsel %vm154, %v1233, %v1186
    %v1254 = vsel %vm154, %v1237, %v1187
    %v1255 = vsel %vm154, %v1241, %v1188
    %v1256 = vsel %vm154, %v1245, %v1189
    %v1257 = vsel %vm154, %v1249, %v1190
    %1258 = vrot.lane.b32.xlu0 %v1216, 127
    %v1259 = vpop.permute.xlu0 %1258
    %1260 = vrot.lane.b32.xlu0 %v1215, 127
    %v1261 = vpop.permute.xlu0 %1260
    %1262 = vrot.lane.b32.xlu0 %v1214, 127
    %v1263 = vpop.permute.xlu0 %1262
    %1264 = vrot.lane.b32.xlu0 %v1213, 127
    %v1265 = vpop.permute.xlu0 %1264
    %1266 = vrot.lane.b32.xlu0 %v1212, 127
    %v1267 = vpop.permute.xlu0 %1266
    %1268 = vrot.lane.b32.xlu0 %v1211, 127
    %v1269 = vpop.permute.xlu0 %1268
    %1270 = vrot.lane.b32.xlu0 %v1210, 127
    %v1271 = vpop.permute.xlu0 %1270
    %1272 = vrot.lane.b32.xlu0 %v1209, 127
    %v1273 = vpop.permute.xlu0 %1272
    %1274 = vrot.lane.b32.xlu0 %v1217, 127
    %v1275 = vpop.permute.xlu0 %1274
    %v1276 = vsel %vm112, %v1273, %v1275
    %v1277 = vsel %vm112, %v1271, %v1273
    %v1278 = vsel %vm112, %v1269, %v1271
    %v1279 = vsel %vm112, %v1267, %v1269
    %v1280 = vsel %vm112, %v1265, %v1267
    %v1281 = vsel %vm112, %v1263, %v1265
    %v1282 = vsel %vm112, %v1261, %v1263
    %v1283 = vsel %vm112, %v1259, %v1261
    %v1284 = vsel %vm112, %v1275, %v1259
    %v1285 = vlaneseq
    %v1286 = vshrl.u32 %v1285, 7
    %v1287 = vsub.s32 0, %v1286
    %v1288 = vrot.slane %v1283, %v1287
    %v1289 = vlaneseq
    %v1290 = vshrl.u32 %v1289, 7
    %v1291 = vsub.s32 0, %v1290
    %v1292 = vrot.slane %v1282, %v1291
    %v1293 = vlaneseq
    %v1294 = vshrl.u32 %v1293, 7
    %v1295 = vsub.s32 0, %v1294
    %v1296 = vrot.slane %v1281, %v1295
    %v1297 = vlaneseq
    %v1298 = vshrl.u32 %v1297, 7
    %v1299 = vsub.s32 0, %v1298
    %v1300 = vrot.slane %v1280, %v1299
    %v1301 = vlaneseq
    %v1302 = vshrl.u32 %v1301, 7
    %v1303 = vsub.s32 0, %v1302
    %v1304 = vrot.slane %v1279, %v1303
    %v1305 = vlaneseq
    %v1306 = vshrl.u32 %v1305, 7
    %v1307 = vsub.s32 0, %v1306
    %v1308 = vrot.slane %v1278, %v1307
    %v1309 = vlaneseq
    %v1310 = vshrl.u32 %v1309, 7
    %v1311 = vsub.s32 0, %v1310
    %v1312 = vrot.slane %v1277, %v1311
    %v1313 = vlaneseq
    %v1314 = vshrl.u32 %v1313, 7
    %v1315 = vsub.s32 0, %v1314
    %v1316 = vrot.slane %v1276, %v1315
    %v1317 = vsel %vm222, %v1288, %v1250
    %v1318 = vsel %vm222, %v1292, %v1251
    %v1319 = vsel %vm222, %v1296, %v1252
    %v1320 = vsel %vm222, %v1300, %v1253
    %v1321 = vsel %vm222, %v1304, %v1254
    %v1322 = vsel %vm222, %v1308, %v1255
    %v1323 = vsel %vm222, %v1312, %v1256
    %v1324 = vsel %vm222, %v1316, %v1257
    %1325 = vrot.lane.b32.xlu0 %v1283, 127
    %v1326 = vpop.permute.xlu0 %1325
    %1327 = vrot.lane.b32.xlu0 %v1282, 127
    %v1328 = vpop.permute.xlu0 %1327
    %1329 = vrot.lane.b32.xlu0 %v1281, 127
    %v1330 = vpop.permute.xlu0 %1329
    %1331 = vrot.lane.b32.xlu0 %v1280, 127
    %v1332 = vpop.permute.xlu0 %1331
    %1333 = vrot.lane.b32.xlu0 %v1279, 127
    %v1334 = vpop.permute.xlu0 %1333
    %1335 = vrot.lane.b32.xlu0 %v1278, 127
    %v1336 = vpop.permute.xlu0 %1335
    %1337 = vrot.lane.b32.xlu0 %v1277, 127
    %v1338 = vpop.permute.xlu0 %1337
    %1339 = vrot.lane.b32.xlu0 %v1276, 127
    %v1340 = vpop.permute.xlu0 %1339
    %1341 = vrot.lane.b32.xlu0 %v1284, 127
    %v1342 = vpop.permute.xlu0 %1341
    %v1343 = vsel %vm112, %v1340, %v1342
    %v1344 = vsel %vm112, %v1338, %v1340
    %v1345 = vsel %vm112, %v1336, %v1338
    %v1346 = vsel %vm112, %v1334, %v1336
    %v1347 = vsel %vm112, %v1332, %v1334
    %v1348 = vsel %vm112, %v1330, %v1332
    %v1349 = vsel %vm112, %v1328, %v1330
    %v1350 = vsel %vm112, %v1326, %v1328
    %v1351 = vsel %vm112, %v1342, %v1326
    %v1352 = vlaneseq
    %v1353 = vshrl.u32 %v1352, 7
    %v1354 = vsub.s32 0, %v1353
    %v1355 = vrot.slane %v1350, %v1354
    %v1356 = vlaneseq
    %v1357 = vshrl.u32 %v1356, 7
    %v1358 = vsub.s32 0, %v1357
    %v1359 = vrot.slane %v1349, %v1358
    %v1360 = vlaneseq
    %v1361 = vshrl.u32 %v1360, 7
    %v1362 = vsub.s32 0, %v1361
    %v1363 = vrot.slane %v1348, %v1362
    %v1364 = vlaneseq
    %v1365 = vshrl.u32 %v1364, 7
    %v1366 = vsub.s32 0, %v1365
    %v1367 = vrot.slane %v1347, %v1366
    %v1368 = vlaneseq
    %v1369 = vshrl.u32 %v1368, 7
    %v1370 = vsub.s32 0, %v1369
    %v1371 = vrot.slane %v1346, %v1370
    %v1372 = vlaneseq
    %v1373 = vshrl.u32 %v1372, 7
    %v1374 = vsub.s32 0, %v1373
    %v1375 = vrot.slane %v1345, %v1374
    %v1376 = vlaneseq
    %v1377 = vshrl.u32 %v1376, 7
    %v1378 = vsub.s32 0, %v1377
    %v1379 = vrot.slane %v1344, %v1378
    %v1380 = vlaneseq
    %v1381 = vshrl.u32 %v1380, 7
    %v1382 = vsub.s32 0, %v1381
    %v1383 = vrot.slane %v1343, %v1382
    %v1384 = vsel %vm290, %v1355, %v1317
    %v1385 = vsel %vm290, %v1359, %v1318
    %v1386 = vsel %vm290, %v1363, %v1319
    %v1387 = vsel %vm290, %v1367, %v1320
    %v1388 = vsel %vm290, %v1371, %v1321
    %v1389 = vsel %vm290, %v1375, %v1322
    %v1390 = vsel %vm290, %v1379, %v1323
    %v1391 = vsel %vm290, %v1383, %v1324
    %1392 = vrot.lane.b32.xlu0 %v1350, 112
    %v1393 = vpop.permute.xlu0 %1392
    %1394 = vrot.lane.b32.xlu0 %v1349, 112
    %v1395 = vpop.permute.xlu0 %1394
    %1396 = vrot.lane.b32.xlu0 %v1348, 112
    %v1397 = vpop.permute.xlu0 %1396
    %1398 = vrot.lane.b32.xlu0 %v1347, 112
    %v1399 = vpop.permute.xlu0 %1398
    %1400 = vrot.lane.b32.xlu0 %v1346, 112
    %v1401 = vpop.permute.xlu0 %1400
    %1402 = vrot.lane.b32.xlu0 %v1345, 112
    %v1403 = vpop.permute.xlu0 %1402
    %1404 = vrot.lane.b32.xlu0 %v1344, 112
    %v1405 = vpop.permute.xlu0 %1404
    %1406 = vrot.lane.b32.xlu0 %v1343, 112
    %v1407 = vpop.permute.xlu0 %1406
    %1408 = vrot.lane.b32.xlu0 %v1351, 112
    %v1409 = vpop.permute.xlu0 %1408
    %v1410 = vsel %vm385, %v1407, %v1409
    %v1411 = vsel %vm385, %v1405, %v1407
    %v1412 = vsel %vm385, %v1403, %v1405
    %v1413 = vsel %vm385, %v1401, %v1403
    %v1414 = vsel %vm385, %v1399, %v1401
    %v1415 = vsel %vm385, %v1397, %v1399
    %v1416 = vsel %vm385, %v1395, %v1397
    %v1417 = vsel %vm385, %v1393, %v1395
    %v1418 = vsel %vm385, %v1409, %v1393
    %v1419 = vlaneseq
    %v1420 = vshrl.u32 %v1419, 7
    %v1421 = vsub.s32 0, %v1420
    %v1422 = vrot.slane %v1417, %v1421
    %v1423 = vlaneseq
    %v1424 = vshrl.u32 %v1423, 7
    %v1425 = vsub.s32 0, %v1424
    %v1426 = vrot.slane %v1416, %v1425
    %v1427 = vlaneseq
    %v1428 = vshrl.u32 %v1427, 7
    %v1429 = vsub.s32 0, %v1428
    %v1430 = vrot.slane %v1415, %v1429
    %v1431 = vlaneseq
    %v1432 = vshrl.u32 %v1431, 7
    %v1433 = vsub.s32 0, %v1432
    %v1434 = vrot.slane %v1414, %v1433
    %v1435 = vlaneseq
    %v1436 = vshrl.u32 %v1435, 7
    %v1437 = vsub.s32 0, %v1436
    %v1438 = vrot.slane %v1413, %v1437
    %v1439 = vlaneseq
    %v1440 = vshrl.u32 %v1439, 7
    %v1441 = vsub.s32 0, %v1440
    %v1442 = vrot.slane %v1412, %v1441
    %v1443 = vlaneseq
    %v1444 = vshrl.u32 %v1443, 7
    %v1445 = vsub.s32 0, %v1444
    %v1446 = vrot.slane %v1411, %v1445
    %v1447 = vlaneseq
    %v1448 = vshrl.u32 %v1447, 7
    %v1449 = vsub.s32 0, %v1448
    %v1450 = vrot.slane %v1410, %v1449
    %v1451 = vsel %vm358, %v1422, %v1384
    %v1452 = vsel %vm358, %v1426, %v1385
    %v1453 = vsel %vm358, %v1430, %v1386
    %v1454 = vsel %vm358, %v1434, %v1387
    %v1455 = vsel %vm358, %v1438, %v1388
    %v1456 = vsel %vm358, %v1442, %v1389
    %v1457 = vsel %vm358, %v1446, %v1390
    %v1458 = vsel %vm358, %v1450, %v1391
    %1459 = vrot.lane.b32.xlu0 %v1417, 127
    %v1460 = vpop.permute.xlu0 %1459
    %1461 = vrot.lane.b32.xlu0 %v1416, 127
    %v1462 = vpop.permute.xlu0 %1461
    %1463 = vrot.lane.b32.xlu0 %v1415, 127
    %v1464 = vpop.permute.xlu0 %1463
    %1465 = vrot.lane.b32.xlu0 %v1414, 127
    %v1466 = vpop.permute.xlu0 %1465
    %1467 = vrot.lane.b32.xlu0 %v1413, 127
    %v1468 = vpop.permute.xlu0 %1467
    %1469 = vrot.lane.b32.xlu0 %v1412, 127
    %v1470 = vpop.permute.xlu0 %1469
    %1471 = vrot.lane.b32.xlu0 %v1411, 127
    %v1472 = vpop.permute.xlu0 %1471
    %1473 = vrot.lane.b32.xlu0 %v1410, 127
    %v1474 = vpop.permute.xlu0 %1473
    %1475 = vrot.lane.b32.xlu0 %v1418, 127
    %v1476 = vpop.permute.xlu0 %1475
    %v1477 = vsel %vm112, %v1474, %v1476
    %v1478 = vsel %vm112, %v1472, %v1474
    %v1479 = vsel %vm112, %v1470, %v1472
    %v1480 = vsel %vm112, %v1468, %v1470
    %v1481 = vsel %vm112, %v1466, %v1468
    %v1482 = vsel %vm112, %v1464, %v1466
    %v1483 = vsel %vm112, %v1462, %v1464
    %v1484 = vsel %vm112, %v1460, %v1462
    %v1485 = vsel %vm112, %v1476, %v1460
    %v1486 = vlaneseq
    %v1487 = vshrl.u32 %v1486, 7
    %v1488 = vsub.s32 0, %v1487
    %v1489 = vrot.slane %v1484, %v1488
    %v1490 = vlaneseq
    %v1491 = vshrl.u32 %v1490, 7
    %v1492 = vsub.s32 0, %v1491
    %v1493 = vrot.slane %v1483, %v1492
    %v1494 = vlaneseq
    %v1495 = vshrl.u32 %v1494, 7
    %v1496 = vsub.s32 0, %v1495
    %v1497 = vrot.slane %v1482, %v1496
    %v1498 = vlaneseq
    %v1499 = vshrl.u32 %v1498, 7
    %v1500 = vsub.s32 0, %v1499
    %v1501 = vrot.slane %v1481, %v1500
    %v1502 = vlaneseq
    %v1503 = vshrl.u32 %v1502, 7
    %v1504 = vsub.s32 0, %v1503
    %v1505 = vrot.slane %v1480, %v1504
    %v1506 = vlaneseq
    %v1507 = vshrl.u32 %v1506, 7
    %v1508 = vsub.s32 0, %v1507
    %v1509 = vrot.slane %v1479, %v1508
    %v1510 = vlaneseq
    %v1511 = vshrl.u32 %v1510, 7
    %v1512 = vsub.s32 0, %v1511
    %v1513 = vrot.slane %v1478, %v1512
    %v1514 = vlaneseq
    %v1515 = vshrl.u32 %v1514, 7
    %v1516 = vsub.s32 0, %v1515
    %v1517 = vrot.slane %v1477, %v1516
    %v1518 = vsel %vm427, %v1489, %v1451
    %v1519 = vsel %vm427, %v1493, %v1452
    %v1520 = vsel %vm427, %v1497, %v1453
    %v1521 = vsel %vm427, %v1501, %v1454
    %v1522 = vsel %vm427, %v1505, %v1455
    %v1523 = vsel %vm427, %v1509, %v1456
    %v1524 = vsel %vm427, %v1513, %v1457
    %v1525 = vsel %vm427, %v1517, %v1458
    %1526 = vrot.lane.b32.xlu0 %v1484, 127
    %v1527 = vpop.permute.xlu0 %1526
    %1528 = vrot.lane.b32.xlu0 %v1483, 127
    %v1529 = vpop.permute.xlu0 %1528
    %1530 = vrot.lane.b32.xlu0 %v1482, 127
    %v1531 = vpop.permute.xlu0 %1530
    %1532 = vrot.lane.b32.xlu0 %v1481, 127
    %v1533 = vpop.permute.xlu0 %1532
    %1534 = vrot.lane.b32.xlu0 %v1480, 127
    %v1535 = vpop.permute.xlu0 %1534
    %1536 = vrot.lane.b32.xlu0 %v1479, 127
    %v1537 = vpop.permute.xlu0 %1536
    %1538 = vrot.lane.b32.xlu0 %v1478, 127
    %v1539 = vpop.permute.xlu0 %1538
    %1540 = vrot.lane.b32.xlu0 %v1477, 127
    %v1541 = vpop.permute.xlu0 %1540
    %1542 = vrot.lane.b32.xlu0 %v1485, 127
    %v1543 = vpop.permute.xlu0 %1542
    %v1544 = vsel %vm112, %v1541, %v1543
    %v1545 = vsel %vm112, %v1539, %v1541
    %v1546 = vsel %vm112, %v1537, %v1539
    %v1547 = vsel %vm112, %v1535, %v1537
    %v1548 = vsel %vm112, %v1533, %v1535
    %v1549 = vsel %vm112, %v1531, %v1533
    %v1550 = vsel %vm112, %v1529, %v1531
    %v1551 = vsel %vm112, %v1527, %v1529
    %v1552 = vsel %vm112, %v1543, %v1527
    %v1553 = vlaneseq
    %v1554 = vshrl.u32 %v1553, 7
    %v1555 = vsub.s32 0, %v1554
    %v1556 = vrot.slane %v1551, %v1555
    %v1557 = vlaneseq
    %v1558 = vshrl.u32 %v1557, 7
    %v1559 = vsub.s32 0, %v1558
    %v1560 = vrot.slane %v1550, %v1559
    %v1561 = vlaneseq
    %v1562 = vshrl.u32 %v1561, 7
    %v1563 = vsub.s32 0, %v1562
    %v1564 = vrot.slane %v1549, %v1563
    %v1565 = vlaneseq
    %v1566 = vshrl.u32 %v1565, 7
    %v1567 = vsub.s32 0, %v1566
    %v1568 = vrot.slane %v1548, %v1567
    %v1569 = vlaneseq
    %v1570 = vshrl.u32 %v1569, 7
    %v1571 = vsub.s32 0, %v1570
    %v1572 = vrot.slane %v1547, %v1571
    %v1573 = vlaneseq
    %v1574 = vshrl.u32 %v1573, 7
    %v1575 = vsub.s32 0, %v1574
    %v1576 = vrot.slane %v1546, %v1575
    %v1577 = vlaneseq
    %v1578 = vshrl.u32 %v1577, 7
    %v1579 = vsub.s32 0, %v1578
    %v1580 = vrot.slane %v1545, %v1579
    %v1581 = vlaneseq
    %v1582 = vshrl.u32 %v1581, 7
    %v1583 = vsub.s32 0, %v1582
    %v1584 = vrot.slane %v1544, %v1583
    %v1585 = vsel %vm495, %v1556, %v1518
    %v1586 = vsel %vm495, %v1560, %v1519
    %v1587 = vsel %vm495, %v1564, %v1520
    %v1588 = vsel %vm495, %v1568, %v1521
    %v1589 = vsel %vm495, %v1572, %v1522
    %v1590 = vsel %vm495, %v1576, %v1523
    %v1591 = vsel %vm495, %v1580, %v1524
    %v1592 = vsel %vm495, %v1584, %v1525
    %1593 = vrot.lane.b32.xlu0 %v1551, 127
    %v1594 = vpop.permute.xlu0 %1593
    %1595 = vrot.lane.b32.xlu0 %v1550, 127
    %v1596 = vpop.permute.xlu0 %1595
    %1597 = vrot.lane.b32.xlu0 %v1549, 127
    %v1598 = vpop.permute.xlu0 %1597
    %1599 = vrot.lane.b32.xlu0 %v1548, 127
    %v1600 = vpop.permute.xlu0 %1599
    %1601 = vrot.lane.b32.xlu0 %v1547, 127
    %v1602 = vpop.permute.xlu0 %1601
    %1603 = vrot.lane.b32.xlu0 %v1546, 127
    %v1604 = vpop.permute.xlu0 %1603
    %1605 = vrot.lane.b32.xlu0 %v1545, 127
    %v1606 = vpop.permute.xlu0 %1605
    %1607 = vrot.lane.b32.xlu0 %v1544, 127
    %v1608 = vpop.permute.xlu0 %1607
    %1609 = vrot.lane.b32.xlu0 %v1552, 127
    %v1610 = vpop.permute.xlu0 %1609
    %v1611 = vsel %vm112, %v1608, %v1610
    %v1612 = vsel %vm112, %v1606, %v1608
    %v1613 = vsel %vm112, %v1604, %v1606
    %v1614 = vsel %vm112, %v1602, %v1604
    %v1615 = vsel %vm112, %v1600, %v1602
    %v1616 = vsel %vm112, %v1598, %v1600
    %v1617 = vsel %vm112, %v1596, %v1598
    %v1618 = vsel %vm112, %v1594, %v1596
    %v1619 = vsel %vm112, %v1610, %v1594
    %v1620 = vlaneseq
    %v1621 = vshrl.u32 %v1620, 7
    %v1622 = vsub.s32 0, %v1621
    %v1623 = vrot.slane %v1618, %v1622
    %v1624 = vlaneseq
    %v1625 = vshrl.u32 %v1624, 7
    %v1626 = vsub.s32 0, %v1625
    %v1627 = vrot.slane %v1617, %v1626
    %v1628 = vlaneseq
    %v1629 = vshrl.u32 %v1628, 7
    %v1630 = vsub.s32 0, %v1629
    %v1631 = vrot.slane %v1616, %v1630
    %v1632 = vlaneseq
    %v1633 = vshrl.u32 %v1632, 7
    %v1634 = vsub.s32 0, %v1633
    %v1635 = vrot.slane %v1615, %v1634
    %v1636 = vlaneseq
    %v1637 = vshrl.u32 %v1636, 7
    %v1638 = vsub.s32 0, %v1637
    %v1639 = vrot.slane %v1614, %v1638
    %v1640 = vlaneseq
    %v1641 = vshrl.u32 %v1640, 7
    %v1642 = vsub.s32 0, %v1641
    %v1643 = vrot.slane %v1613, %v1642
    %v1644 = vlaneseq
    %v1645 = vshrl.u32 %v1644, 7
    %v1646 = vsub.s32 0, %v1645
    %v1647 = vrot.slane %v1612, %v1646
    %v1648 = vlaneseq
    %v1649 = vshrl.u32 %v1648, 7
    %v1650 = vsub.s32 0, %v1649
    %v1651 = vrot.slane %v1611, %v1650
    %v1652 = vsel %vm563, %v1623, %v1585
    %v1653 = vsel %vm563, %v1627, %v1586
    %v1654 = vsel %vm563, %v1631, %v1587
    %v1655 = vsel %vm563, %v1635, %v1588
    %v1656 = vsel %vm563, %v1639, %v1589
    %v1657 = vsel %vm563, %v1643, %v1590
    %v1658 = vsel %vm563, %v1647, %v1591
    %v1659 = vsel %vm563, %v1651, %v1592
    %1660 = vst [vmem:[#allocation2 + $0x80] sm:$0xff] %v1652
    %1661 = vst [vmem:[#allocation2 + $0x88] sm:$0xff] %v1653
    %1662 = vst [vmem:[#allocation2 + $0x90] sm:$0xff] %v1654
    %1663 = vst [vmem:[#allocation2 + $0x98] sm:$0xff] %v1655
    %1664 = vst [vmem:[#allocation2 + $0xa0] sm:$0xff] %v1656
    %1665 = vst [vmem:[#allocation2 + $0xa8] sm:$0xff] %v1657
    %1666 = vst [vmem:[#allocation2 + $0xb0] sm:$0xff] %v1658
    %1667 = vst [vmem:[#allocation2 + $0xb8] sm:$0xff] %v1659
    %1668 = vrot.lane.b32.xlu0 %v1618, 127
    %v1669 = vpop.permute.xlu0 %1668
    %1670 = vrot.lane.b32.xlu0 %v1617, 127
    %v1671 = vpop.permute.xlu0 %1670
    %1672 = vrot.lane.b32.xlu0 %v1616, 127
    %v1673 = vpop.permute.xlu0 %1672
    %1674 = vrot.lane.b32.xlu0 %v1615, 127
    %v1675 = vpop.permute.xlu0 %1674
    %1676 = vrot.lane.b32.xlu0 %v1614, 127
    %v1677 = vpop.permute.xlu0 %1676
    %1678 = vrot.lane.b32.xlu0 %v1613, 127
    %v1679 = vpop.permute.xlu0 %1678
    %1680 = vrot.lane.b32.xlu0 %v1612, 127
    %v1681 = vpop.permute.xlu0 %1680
    %1682 = vrot.lane.b32.xlu0 %v1611, 127
    %v1683 = vpop.permute.xlu0 %1682
    %1684 = vrot.lane.b32.xlu0 %v1619, 127
    %v1685 = vpop.permute.xlu0 %1684
    %v1686 = vsel %vm112, %v1683, %v1685
    %v1687 = vsel %vm112, %v1681, %v1683
    %v1688 = vsel %vm112, %v1679, %v1681
    %v1689 = vsel %vm112, %v1677, %v1679
    %v1690 = vsel %vm112, %v1675, %v1677
    %v1691 = vsel %vm112, %v1673, %v1675
    %v1692 = vsel %vm112, %v1671, %v1673
    %v1693 = vsel %vm112, %v1669, %v1671
    %v1694 = vlaneseq
    %v1695 = vshrl.u32 %v1694, 7
    %v1696 = vsub.s32 0, %v1695
    %v1697 = vrot.slane %v1693, %v1696
    %v1698 = vlaneseq
    %v1699 = vshrl.u32 %v1698, 7
    %v1700 = vsub.s32 0, %v1699
    %v1701 = vrot.slane %v1692, %v1700
    %v1702 = vlaneseq
    %v1703 = vshrl.u32 %v1702, 7
    %v1704 = vsub.s32 0, %v1703
    %v1705 = vrot.slane %v1691, %v1704
    %v1706 = vlaneseq
    %v1707 = vshrl.u32 %v1706, 7
    %v1708 = vsub.s32 0, %v1707
    %v1709 = vrot.slane %v1690, %v1708
    %v1710 = vlaneseq
    %v1711 = vshrl.u32 %v1710, 7
    %v1712 = vsub.s32 0, %v1711
    %v1713 = vrot.slane %v1689, %v1712
    %v1714 = vlaneseq
    %v1715 = vshrl.u32 %v1714, 7
    %v1716 = vsub.s32 0, %v1715
    %v1717 = vrot.slane %v1688, %v1716
    %v1718 = vlaneseq
    %v1719 = vshrl.u32 %v1718, 7
    %v1720 = vsub.s32 0, %v1719
    %v1721 = vrot.slane %v1687, %v1720
    %v1722 = vlaneseq
    %v1723 = vshrl.u32 %v1722, 7
    %v1724 = vsub.s32 0, %v1723
    %v1725 = vrot.slane %v1686, %v1724
    %v1726 = vsel %vm77, %v1697, 0.0
    %v1727 = vsel %vm77, %v1701, 0.0
    %v1728 = vsel %vm77, %v1705, 0.0
    %v1729 = vsel %vm77, %v1709, 0.0
    %v1730 = vsel %vm77, %v1713, 0.0
    %v1731 = vsel %vm77, %v1717, 0.0
    %v1732 = vsel %vm77, %v1721, 0.0
    %v1733 = vsel %vm77, %v1725, 0.0
    %1734 = vst [vmem:[#allocation2 + $0xc0] sm:$0xff] %v1726
    %1735 = vst [vmem:[#allocation2 + $0xc8] sm:$0xff] %v1727
    %1736 = vst [vmem:[#allocation2 + $0xd0] sm:$0xff] %v1728
    %1737 = vst [vmem:[#allocation2 + $0xd8] sm:$0xff] %v1729
    %1738 = vst [vmem:[#allocation2 + $0xe0] sm:$0xff] %v1730
    %1739 = vst [vmem:[#allocation2 + $0xe8] sm:$0xff] %v1731
    %1740 = vst [vmem:[#allocation2 + $0xf0] sm:$0xff] %v1732
    %1741 = vst [vmem:[#allocation2 + $0xf8] sm:$0xff] %v1733
    %v1742 = vld [vmem:[#allocation3] sm:$0xff]
    %v1743 = vld [vmem:[#allocation3 + $0x8] sm:$0xff]
    %v1744 = vld [vmem:[#allocation3 + $0x10] sm:$0xff]
    %v1745 = vld [vmem:[#allocation3 + $0x18] sm:$0xff]
    %v1746 = vld [vmem:[#allocation3 + $0x20] sm:$0xff]
    %v1747 = vld [vmem:[#allocation3 + $0x28] sm:$0xff]
    %v1748 = vld [vmem:[#allocation3 + $0x30] sm:$0xff]
    %v1749 = vld [vmem:[#allocation3 + $0x38] sm:$0xff]
    %v1750 = vld [vmem:[#allocation3 + $0x40] sm:$0xff]
    %v1751 = vld [vmem:[#allocation3 + $0x48] sm:$0xff]
    %v1752 = vld [vmem:[#allocation3 + $0x50] sm:$0xff]
    %v1753 = vld [vmem:[#allocation3 + $0x58] sm:$0xff]
    %v1754 = vld [vmem:[#allocation3 + $0x60] sm:$0xff]
    %v1755 = vld [vmem:[#allocation3 + $0x68] sm:$0xff]
    %v1756 = vld [vmem:[#allocation3 + $0x70] sm:$0xff]
    %v1757 = vld [vmem:[#allocation3 + $0x78] sm:$0xff]
    %v1758 = vld [vmem:[#allocation3 + $0x80] sm:$0xff]
    %v1759 = vld [vmem:[#allocation3 + $0x88] sm:$0xff]
    %v1760 = vld [vmem:[#allocation3 + $0x90] sm:$0xff]
    %v1761 = vld [vmem:[#allocation3 + $0x98] sm:$0xff]
    %v1762 = vld [vmem:[#allocation3 + $0xa0] sm:$0xff]
    %v1763 = vld [vmem:[#allocation3 + $0xa8] sm:$0xff]
    %v1764 = vld [vmem:[#allocation3 + $0xb0] sm:$0xff]
    %v1765 = vld [vmem:[#allocation3 + $0xb8] sm:$0xff]
    %v1766 = vld [vmem:[#allocation3 + $0xc0] sm:$0xff]
    %v1767 = vld [vmem:[#allocation3 + $0xc8] sm:$0xff]
    %v1768 = vld [vmem:[#allocation3 + $0xd0] sm:$0xff]
    %v1769 = vld [vmem:[#allocation3 + $0xd8] sm:$0xff]
    %v1770 = vld [vmem:[#allocation3 + $0xe0] sm:$0xff]
    %v1771 = vld [vmem:[#allocation3 + $0xe8] sm:$0xff]
    %v1772 = vld [vmem:[#allocation3 + $0xf0] sm:$0xff]
    %v1773 = vld [vmem:[#allocation3 + $0xf8] sm:$0xff]
    %v1774 = vld [vmem:[#allocation3 + $0x100] sm:$0xff]
    %v1775 = vld [vmem:[#allocation3 + $0x108] sm:$0xff]
    %v1776 = vld [vmem:[#allocation3 + $0x110] sm:$0xff]
    %v1777 = vld [vmem:[#allocation3 + $0x118] sm:$0xff]
    %v1778 = vld [vmem:[#allocation3 + $0x120] sm:$0xff]
    %v1779 = vld [vmem:[#allocation3 + $0x128] sm:$0xff]
    %v1780 = vld [vmem:[#allocation3 + $0x130] sm:$0xff]
    %v1781 = vld [vmem:[#allocation3 + $0x138] sm:$0xff]
    %v1782 = vld [vmem:[#allocation3 + $0x140] sm:$0xff]
    %v1783 = vld [vmem:[#allocation3 + $0x148] sm:$0xff]
    %v1784 = vld [vmem:[#allocation3 + $0x150] sm:$0xff]
    %v1785 = vld [vmem:[#allocation3 + $0x158] sm:$0xff]
    %v1786 = vld [vmem:[#allocation3 + $0x160] sm:$0xff]
    %v1787 = vld [vmem:[#allocation3 + $0x168] sm:$0xff]
    %v1788 = vld [vmem:[#allocation3 + $0x170] sm:$0xff]
    %v1789 = vld [vmem:[#allocation3 + $0x178] sm:$0xff]
    %v1790 = vld [vmem:[#allocation3 + $0x180] sm:$0xff]
    %v1791 = vld [vmem:[#allocation3 + $0x188] sm:$0xff]
    %v1792 = vld [vmem:[#allocation3 + $0x190] sm:$0xff]
    %v1793 = vld [vmem:[#allocation3 + $0x198] sm:$0xff]
    %v1794 = vld [vmem:[#allocation3 + $0x1a0] sm:$0xff]
    %v1795 = vld [vmem:[#allocation3 + $0x1a8] sm:$0xff]
    %v1796 = vld [vmem:[#allocation3 + $0x1b0] sm:$0xff]
    %v1797 = vld [vmem:[#allocation3 + $0x1b8] sm:$0xff]
    %v1798 = vld [vmem:[#allocation3 + $0x1c0] sm:$0xff]
    %v1799 = vld [vmem:[#allocation3 + $0x1c8] sm:$0xff]
    %v1800 = vld [vmem:[#allocation3 + $0x1d0] sm:$0xff]
    %v1801 = vld [vmem:[#allocation3 + $0x1d8] sm:$0xff]
    %v1802 = vld [vmem:[#allocation3 + $0x1e0] sm:$0xff]
    %v1803 = vld [vmem:[#allocation3 + $0x1e8] sm:$0xff]
    %v1804 = vld [vmem:[#allocation3 + $0x1f0] sm:$0xff]
    %v1805 = vld [vmem:[#allocation3 + $0x1f8] sm:$0xff]
    %v1806 = vld [vmem:[#allocation2] sm:$0xff]
    %v1807 = vld [vmem:[#allocation2 + $0x8] sm:$0xff]
    %v1808 = vld [vmem:[#allocation2 + $0x10] sm:$0xff]
    %v1809 = vld [vmem:[#allocation2 + $0x18] sm:$0xff]
    %v1810 = vld [vmem:[#allocation2 + $0x40] sm:$0xff]
    %v1811 = vld [vmem:[#allocation2 + $0x48] sm:$0xff]
    %v1812 = vld [vmem:[#allocation2 + $0x50] sm:$0xff]
    %v1813 = vld [vmem:[#allocation2 + $0x58] sm:$0xff]
    %v1814 = vld [vmem:[#allocation2 + $0x80] sm:$0xff]
    %v1815 = vld [vmem:[#allocation2 + $0x88] sm:$0xff]
    %v1816 = vld [vmem:[#allocation2 + $0x90] sm:$0xff]
    %v1817 = vld [vmem:[#allocation2 + $0x98] sm:$0xff]
    %v1818 = vld [vmem:[#allocation2 + $0xc0] sm:$0xff]
    %v1819 = vld [vmem:[#allocation2 + $0xc8] sm:$0xff]
    %v1820 = vld [vmem:[#allocation2 + $0xd0] sm:$0xff]
    %v1821 = vld [vmem:[#allocation2 + $0xd8] sm:$0xff]
    %v1822 = vpack.c.bf16 %v1810, %v1806
    %v1823 = vpack.c.bf16 %v1811, %v1807
    %v1824 = vpack.c.bf16 %v1812, %v1808
    %v1825 = vpack.c.bf16 %v1813, %v1809
    %v1826 = vpack.c.bf16 %v1818, %v1814
    %v1827 = vpack.c.bf16 %v1819, %v1815
    %v1828 = vpack.c.bf16 %v1820, %v1816
    %v1829 = vpack.c.bf16 %v1821, %v1817
    %v1894 = vunpack.c.l.b16 %v1742
    %v1895 = vunpack.c.h.b16 %v1742
    %v1896 = vunpack.c.l.b16 %v1743
    %v1897 = vunpack.c.h.b16 %v1743
    %v1898 = vunpack.c.l.b16 %v1744
    %v1899 = vunpack.c.h.b16 %v1744
    %v1900 = vunpack.c.l.b16 %v1745
    %v1901 = vunpack.c.h.b16 %v1745
    %v1902 = vunpack.c.l.b16 %v1746
    %v1903 = vunpack.c.h.b16 %v1746
    %v1904 = vunpack.c.l.b16 %v1747
    %v1905 = vunpack.c.h.b16 %v1747
    %v1906 = vunpack.c.l.b16 %v1748
    %v1907 = vunpack.c.h.b16 %v1748
    %v1908 = vunpack.c.l.b16 %v1749
    %v1909 = vunpack.c.h.b16 %v1749
    %v1910 = vunpack.c.l.b16 %v1750
    %v1911 = vunpack.c.h.b16 %v1750
    %v1912 = vunpack.c.l.b16 %v1751
    %v1913 = vunpack.c.h.b16 %v1751
    %v1914 = vunpack.c.l.b16 %v1752
    %v1915 = vunpack.c.h.b16 %v1752
    %v1916 = vunpack.c.l.b16 %v1753
    %v1917 = vunpack.c.h.b16 %v1753
    %v1918 = vunpack.c.l.b16 %v1754
    %v1919 = vunpack.c.h.b16 %v1754
    %v1920 = vunpack.c.l.b16 %v1755
    %v1921 = vunpack.c.h.b16 %v1755
    %v1922 = vunpack.c.l.b16 %v1756
    %v1923 = vunpack.c.h.b16 %v1756
    %v1924 = vunpack.c.l.b16 %v1757
    %v1925 = vunpack.c.h.b16 %v1757
    %v1926 = vunpack.c.l.b16 %v1758
    %v1927 = vunpack.c.h.b16 %v1758
    %v1928 = vunpack.c.l.b16 %v1759
    %v1929 = vunpack.c.h.b16 %v1759
    %v1930 = vunpack.c.l.b16 %v1760
    %v1931 = vunpack.c.h.b16 %v1760
    %v1932 = vunpack.c.l.b16 %v1761
    %v1933 = vunpack.c.h.b16 %v1761
    %v1934 = vunpack.c.l.b16 %v1762
    %v1935 = vunpack.c.h.b16 %v1762
    %v1936 = vunpack.c.l.b16 %v1763
    %v1937 = vunpack.c.h.b16 %v1763
    %v1938 = vunpack.c.l.b16 %v1764
    %v1939 = vunpack.c.h.b16 %v1764
    %v1940 = vunpack.c.l.b16 %v1765
    %v1941 = vunpack.c.h.b16 %v1765
    %v1942 = vunpack.c.l.b16 %v1766
    %v1943 = vunpack.c.h.b16 %v1766
    %v1944 = vunpack.c.l.b16 %v1767
    %v1945 = vunpack.c.h.b16 %v1767
    %v1946 = vunpack.c.l.b16 %v1768
    %v1947 = vunpack.c.h.b16 %v1768
    %v1948 = vunpack.c.l.b16 %v1769
    %v1949 = vunpack.c.h.b16 %v1769
    %v1950 = vunpack.c.l.b16 %v1770
    %v1951 = vunpack.c.h.b16 %v1770
    %v1952 = vunpack.c.l.b16 %v1771
    %v1953 = vunpack.c.h.b16 %v1771
    %v1954 = vunpack.c.l.b16 %v1772
    %v1955 = vunpack.c.h.b16 %v1772
    %v1956 = vunpack.c.l.b16 %v1773
    %v1957 = vunpack.c.h.b16 %v1773
    %v1958 = vunpack.c.l.b16 %v1774
    %v1959 = vunpack.c.h.b16 %v1774
    %v1960 = vunpack.c.l.b16 %v1775
    %v1961 = vunpack.c.h.b16 %v1775
    %v1962 = vunpack.c.l.b16 %v1776
    %v1963 = vunpack.c.h.b16 %v1776
    %v1964 = vunpack.c.l.b16 %v1777
    %v1965 = vunpack.c.h.b16 %v1777
    %v1966 = vunpack.c.l.b16 %v1778
    %v1967 = vunpack.c.h.b16 %v1778
    %v1968 = vunpack.c.l.b16 %v1779
    %v1969 = vunpack.c.h.b16 %v1779
    %v1970 = vunpack.c.l.b16 %v1780
    %v1971 = vunpack.c.h.b16 %v1780
    %v1972 = vunpack.c.l.b16 %v1781
    %v1973 = vunpack.c.h.b16 %v1781
    %v1974 = vunpack.c.l.b16 %v1782
    %v1975 = vunpack.c.h.b16 %v1782
    %v1976 = vunpack.c.l.b16 %v1783
    %v1977 = vunpack.c.h.b16 %v1783
    %v1978 = vunpack.c.l.b16 %v1784
    %v1979 = vunpack.c.h.b16 %v1784
    %v1980 = vunpack.c.l.b16 %v1785
    %v1981 = vunpack.c.h.b16 %v1785
    %v1982 = vunpack.c.l.b16 %v1786
    %v1983 = vunpack.c.h.b16 %v1786
    %v1984 = vunpack.c.l.b16 %v1787
    %v1985 = vunpack.c.h.b16 %v1787
    %v1986 = vunpack.c.l.b16 %v1788
    %v1987 = vunpack.c.h.b16 %v1788
    %v1988 = vunpack.c.l.b16 %v1789
    %v1989 = vunpack.c.h.b16 %v1789
    %v1990 = vunpack.c.l.b16 %v1790
    %v1991 = vunpack.c.h.b16 %v1790
    %v1992 = vunpack.c.l.b16 %v1791
    %v1993 = vunpack.c.h.b16 %v1791
    %v1994 = vunpack.c.l.b16 %v1792
    %v1995 = vunpack.c.h.b16 %v1792
    %v1996 = vunpack.c.l.b16 %v1793
    %v1997 = vunpack.c.h.b16 %v1793
    %v1998 = vunpack.c.l.b16 %v1794
    %v1999 = vunpack.c.h.b16 %v1794
    %v2000 = vunpack.c.l.b16 %v1795
    %v2001 = vunpack.c.h.b16 %v1795
    %v2002 = vunpack.c.l.b16 %v1796
    %v2003 = vunpack.c.h.b16 %v1796
    %v2004 = vunpack.c.l.b16 %v1797
    %v2005 = vunpack.c.h.b16 %v1797
    %v2006 = vunpack.c.l.b16 %v1798
    %v2007 = vunpack.c.h.b16 %v1798
    %v2008 = vunpack.c.l.b16 %v1799
    %v2009 = vunpack.c.h.b16 %v1799
    %v2010 = vunpack.c.l.b16 %v1800
    %v2011 = vunpack.c.h.b16 %v1800
    %v2012 = vunpack.c.l.b16 %v1801
    %v2013 = vunpack.c.h.b16 %v1801
    %v2014 = vunpack.c.l.b16 %v1802
    %v2015 = vunpack.c.h.b16 %v1802
    %v2016 = vunpack.c.l.b16 %v1803
    %v2017 = vunpack.c.h.b16 %v1803
    %v2018 = vunpack.c.l.b16 %v1804
    %v2019 = vunpack.c.h.b16 %v1804
    %v2020 = vunpack.c.l.b16 %v1805
    %v2021 = vunpack.c.h.b16 %v1805
    %v2022 = vpack.c.b16 %v1896, %v1894
    %v2023 = vpack.c.b16 %v1897, %v1895
    %v2024 = vpack.c.b16 %v1900, %v1898
    %v2025 = vpack.c.b16 %v1901, %v1899
    %v2026 = vpack.c.b16 %v1904, %v1902
    %v2027 = vpack.c.b16 %v1905, %v1903
    %v2028 = vpack.c.b16 %v1908, %v1906
    %v2029 = vpack.c.b16 %v1909, %v1907
    %v2030 = vpack.c.b16 %v1912, %v1910
    %v2031 = vpack.c.b16 %v1913, %v1911
    %v2032 = vpack.c.b16 %v1916, %v1914
    %v2033 = vpack.c.b16 %v1917, %v1915
    %v2034 = vpack.c.b16 %v1920, %v1918
    %v2035 = vpack.c.b16 %v1921, %v1919
    %v2036 = vpack.c.b16 %v1924, %v1922
    %v2037 = vpack.c.b16 %v1925, %v1923
    %v2038 = vpack.c.b16 %v1928, %v1926
    %v2039 = vpack.c.b16 %v1929, %v1927
    %v2040 = vpack.c.b16 %v1932, %v1930
    %v2041 = vpack.c.b16 %v1933, %v1931
    %v2042 = vpack.c.b16 %v1936, %v1934
    %v2043 = vpack.c.b16 %v1937, %v1935
    %v2044 = vpack.c.b16 %v1940, %v1938
    %v2045 = vpack.c.b16 %v1941, %v1939
    %v2046 = vpack.c.b16 %v1944, %v1942
    %v2047 = vpack.c.b16 %v1945, %v1943
    %v2048 = vpack.c.b16 %v1948, %v1946
    %v2049 = vpack.c.b16 %v1949, %v1947
    %v2050 = vpack.c.b16 %v1952, %v1950
    %v2051 = vpack.c.b16 %v1953, %v1951
    %v2052 = vpack.c.b16 %v1956, %v1954
    %v2053 = vpack.c.b16 %v1957, %v1955
    %v2054 = vpack.c.b16 %v1960, %v1958
    %v2055 = vpack.c.b16 %v1961, %v1959
    %v2056 = vpack.c.b16 %v1964, %v1962
    %v2057 = vpack.c.b16 %v1965, %v1963
    %v2058 = vpack.c.b16 %v1968, %v1966
    %v2059 = vpack.c.b16 %v1969, %v1967
    %v2060 = vpack.c.b16 %v1972, %v1970
    %v2061 = vpack.c.b16 %v1973, %v1971
    %v2062 = vpack.c.b16 %v1976, %v1974
    %v2063 = vpack.c.b16 %v1977, %v1975
    %v2064 = vpack.c.b16 %v1980, %v1978
    %v2065 = vpack.c.b16 %v1981, %v1979
    %v2066 = vpack.c.b16 %v1984, %v1982
    %v2067 = vpack.c.b16 %v1985, %v1983
    %v2068 = vpack.c.b16 %v1988, %v1986
    %v2069 = vpack.c.b16 %v1989, %v1987
    %v2070 = vpack.c.b16 %v1992, %v1990
    %v2071 = vpack.c.b16 %v1993, %v1991
    %v2072 = vpack.c.b16 %v1996, %v1994
    %v2073 = vpack.c.b16 %v1997, %v1995
    %v2074 = vpack.c.b16 %v2000, %v1998
    %v2075 = vpack.c.b16 %v2001, %v1999
    %v2076 = vpack.c.b16 %v2004, %v2002
    %v2077 = vpack.c.b16 %v2005, %v2003
    %v2078 = vpack.c.b16 %v2008, %v2006
    %v2079 = vpack.c.b16 %v2009, %v2007
    %v2080 = vpack.c.b16 %v2012, %v2010
    %v2081 = vpack.c.b16 %v2013, %v2011
    %v2082 = vpack.c.b16 %v2016, %v2014
    %v2083 = vpack.c.b16 %v2017, %v2015
    %v2084 = vpack.c.b16 %v2020, %v2018
    %v2085 = vpack.c.b16 %v2021, %v2019
    %2150 = vmatprep.subr.bf16.mxu0 %v2023
    %2151 = vmatpush1.bf16.msra.mxu0 %v2022
    %2152 = vmatprep.subr.bf16.mxu0 %v2025
    %2153 = vmatpush1.bf16.msra.mxu0 %v2024
    %2154 = vmatprep.subr.bf16.mxu0 %v2027
    %2155 = vmatpush1.bf16.msra.mxu0 %v2026
    %2156 = vmatprep.subr.bf16.mxu0 %v2029
    %2157 = vmatpush1.bf16.msra.mxu0 %v2028
    %2158 = vmatprep.subr.bf16.mxu0 %v2031
    %2159 = vmatpush1.bf16.msra.mxu0 %v2030
    %2160 = vmatprep.subr.bf16.mxu0 %v2033
    %2161 = vmatpush1.bf16.msra.mxu0 %v2032
    %2162 = vmatprep.subr.bf16.mxu0 %v2035
    %2163 = vmatpush1.bf16.msra.mxu0 %v2034
    %2164 = vmatprep.subr.bf16.mxu0 %v2037
    %2165 = vmatpush1.bf16.msra.mxu0 %v2036
    %2166 = vmatprep.subr.bf16.mxu0 %v2039
    %2167 = vmatpush1.bf16.msra.mxu0 %v2038
    %2168 = vmatprep.subr.bf16.mxu0 %v2041
    %2169 = vmatpush1.bf16.msra.mxu0 %v2040
    %2170 = vmatprep.subr.bf16.mxu0 %v2043
    %2171 = vmatpush1.bf16.msra.mxu0 %v2042
    %2172 = vmatprep.subr.bf16.mxu0 %v2045
    %2173 = vmatpush1.bf16.msra.mxu0 %v2044
    %2174 = vmatprep.subr.bf16.mxu0 %v2047
    %2175 = vmatpush1.bf16.msra.mxu0 %v2046
    %2176 = vmatprep.subr.bf16.mxu0 %v2049
    %2177 = vmatpush1.bf16.msra.mxu0 %v2048
    %2178 = vmatprep.subr.bf16.mxu0 %v2051
    %2179 = vmatpush1.bf16.msra.mxu0 %v2050
    %2180 = vmatprep.subr.bf16.mxu0 %v2053
    %2181 = vmatpush1.bf16.msra.mxu0 %v2052
    %2182 = vmatprep.mubr.bf16.mxu0 %v1823
    %2183 = vmatmul.mubr.bf16.gmra.mrb[0].mxu0 %v1822
    %v2184 = vpop.f32.mrb[0].mxu0
    %v2185 = vadd.f32 0.0, %v2184
    %v2186 = vpop.f32.mrb[0].mxu0
    %v2187 = vadd.f32 0.0, %v2186
    %v2188 = vpop.f32.mrb[0].mxu0
    %v2189 = vadd.f32 0.0, %v2188
    %v2190 = vpop.f32.mrb[0].mxu0
    %v2191 = vadd.f32 0.0, %v2190
    %2192 = vmatprep.mubr.bf16.mxu0 %v1827
    %2193 = vmatmul.mubr.bf16.gmra.mrb[0].mxu0 %v1826
    %v2194 = vpop.f32.mrb[0].mxu0
    %v2195 = vadd.f32 0.0, %v2194
    %v2196 = vpop.f32.mrb[0].mxu0
    %v2197 = vadd.f32 0.0, %v2196
    %v2198 = vpop.f32.mrb[0].mxu0
    %v2199 = vadd.f32 0.0, %v2198
    %v2200 = vpop.f32.mrb[0].mxu0
    %v2201 = vadd.f32 0.0, %v2200
    %2202 = vdwg.mxu0
    %2203 = vmatprep.subr.bf16.mxu0 %v2055
    %2204 = vmatpush1.bf16.msra.mxu0 %v2054
    %2205 = vmatprep.subr.bf16.mxu0 %v2057
    %2206 = vmatpush1.bf16.msra.mxu0 %v2056
    %2207 = vmatprep.subr.bf16.mxu0 %v2059
    %2208 = vmatpush1.bf16.msra.mxu0 %v2058
    %2209 = vmatprep.subr.bf16.mxu0 %v2061
    %2210 = vmatpush1.bf16.msra.mxu0 %v2060
    %2211 = vmatprep.subr.bf16.mxu0 %v2063
    %2212 = vmatpush1.bf16.msra.mxu0 %v2062
    %2213 = vmatprep.subr.bf16.mxu0 %v2065
    %2214 = vmatpush1.bf16.msra.mxu0 %v2064
    %2215 = vmatprep.subr.bf16.mxu0 %v2067
    %2216 = vmatpush1.bf16.msra.mxu0 %v2066
    %2217 = vmatprep.subr.bf16.mxu0 %v2069
    %2218 = vmatpush1.bf16.msra.mxu0 %v2068
    %2219 = vmatprep.subr.bf16.mxu0 %v2071
    %2220 = vmatpush1.bf16.msra.mxu0 %v2070
    %2221 = vmatprep.subr.bf16.mxu0 %v2073
    %2222 = vmatpush1.bf16.msra.mxu0 %v2072
    %2223 = vmatprep.subr.bf16.mxu0 %v2075
    %2224 = vmatpush1.bf16.msra.mxu0 %v2074
    %2225 = vmatprep.subr.bf16.mxu0 %v2077
    %2226 = vmatpush1.bf16.msra.mxu0 %v2076
    %2227 = vmatprep.subr.bf16.mxu0 %v2079
    %2228 = vmatpush1.bf16.msra.mxu0 %v2078
    %2229 = vmatprep.subr.bf16.mxu0 %v2081
    %2230 = vmatpush1.bf16.msra.mxu0 %v2080
    %2231 = vmatprep.subr.bf16.mxu0 %v2083
    %2232 = vmatpush1.bf16.msra.mxu0 %v2082
    %2233 = vmatprep.subr.bf16.mxu0 %v2085
    %2234 = vmatpush1.bf16.msra.mxu0 %v2084
    %2235 = vmatprep.mubr.bf16.mxu0 %v1825
    %2236 = vmatmul.mubr.bf16.gmra.mrb[0].mxu0 %v1824
    %v2237 = vpop.f32.mrb[0].mxu0
    %v2238 = vadd.f32 %v2185, %v2237
    %v2239 = vpop.f32.mrb[0].mxu0
    %v2240 = vadd.f32 %v2187, %v2239
    %v2241 = vpop.f32.mrb[0].mxu0
    %v2242 = vadd.f32 %v2189, %v2241
    %v2243 = vpop.f32.mrb[0].mxu0
    %v2244 = vadd.f32 %v2191, %v2243
    %2245 = vmatprep.mubr.bf16.mxu0 %v1829
    %2246 = vmatmul.mubr.bf16.gmra.mrb[0].mxu0 %v1828
    %v2247 = vpop.f32.mrb[0].mxu0
    %v2248 = vadd.f32 %v2195, %v2247
    %v2249 = vpop.f32.mrb[0].mxu0
    %v2250 = vadd.f32 %v2197, %v2249
    %v2251 = vpop.f32.mrb[0].mxu0
    %v2252 = vadd.f32 %v2199, %v2251
    %v2253 = vpop.f32.mrb[0].mxu0
    %v2254 = vadd.f32 %v2201, %v2253
    %2255 = vdwg.mxu0
    %v2256 = vpack.c.bf16 %v2242, %v2238
    %v2257 = vpack.c.bf16 %v2244, %v2240
    %v2258 = vpack.c.bf16 %v2252, %v2248
    %v2259 = vpack.c.bf16 %v2254, %v2250
    %v2260 = vld [vmem:[#allocation2 + $0x20] sm:$0xff]
    %v2261 = vld [vmem:[#allocation2 + $0x28] sm:$0xff]
    %v2262 = vld [vmem:[#allocation2 + $0x30] sm:$0xff]
    %v2263 = vld [vmem:[#allocation2 + $0x38] sm:$0xff]
    %v2264 = vld [vmem:[#allocation2 + $0x60] sm:$0xff]
    %v2265 = vld [vmem:[#allocation2 + $0x68] sm:$0xff]
    %v2266 = vld [vmem:[#allocation2 + $0x70] sm:$0xff]
    %v2267 = vld [vmem:[#allocation2 + $0x78] sm:$0xff]
    %v2268 = vld [vmem:[#allocation2 + $0xa0] sm:$0xff]
    %v2269 = vld [vmem:[#allocation2 + $0xa8] sm:$0xff]
    %v2270 = vld [vmem:[#allocation2 + $0xb0] sm:$0xff]
    %v2271 = vld [vmem:[#allocation2 + $0xb8] sm:$0xff]
    %v2272 = vld [vmem:[#allocation2 + $0xe0] sm:$0xff]
    %v2273 = vld [vmem:[#allocation2 + $0xe8] sm:$0xff]
    %v2274 = vld [vmem:[#allocation2 + $0xf0] sm:$0xff]
    %v2275 = vld [vmem:[#allocation2 + $0xf8] sm:$0xff]
    %v2276 = vpack.c.bf16 %v2264, %v2260
    %v2277 = vpack.c.bf16 %v2265, %v2261
    %v2278 = vpack.c.bf16 %v2266, %v2262
    %v2279 = vpack.c.bf16 %v2267, %v2263
    %v2280 = vpack.c.bf16 %v2272, %v2268
    %v2281 = vpack.c.bf16 %v2273, %v2269
    %v2282 = vpack.c.bf16 %v2274, %v2270
    %v2283 = vpack.c.bf16 %v2275, %v2271
    %2284 = vmatprep.subr.bf16.mxu0 %v2023
    %2285 = vmatpush1.bf16.msra.mxu0 %v2022
    %2286 = vmatprep.subr.bf16.mxu0 %v2025
    %2287 = vmatpush1.bf16.msra.mxu0 %v2024
    %2288 = vmatprep.subr.bf16.mxu0 %v2027
    %2289 = vmatpush1.bf16.msra.mxu0 %v2026
    %2290 = vmatprep.subr.bf16.mxu0 %v2029
    %2291 = vmatpush1.bf16.msra.mxu0 %v2028
    %2292 = vmatprep.subr.bf16.mxu0 %v2031
    %2293 = vmatpush1.bf16.msra.mxu0 %v2030
    %2294 = vmatprep.subr.bf16.mxu0 %v2033
    %2295 = vmatpush1.bf16.msra.mxu0 %v2032
    %2296 = vmatprep.subr.bf16.mxu0 %v2035
    %2297 = vmatpush1.bf16.msra.mxu0 %v2034
    %2298 = vmatprep.subr.bf16.mxu0 %v2037
    %2299 = vmatpush1.bf16.msra.mxu0 %v2036
    %2300 = vmatprep.subr.bf16.mxu0 %v2039
    %2301 = vmatpush1.bf16.msra.mxu0 %v2038
    %2302 = vmatprep.subr.bf16.mxu0 %v2041
    %2303 = vmatpush1.bf16.msra.mxu0 %v2040
    %2304 = vmatprep.subr.bf16.mxu0 %v2043
    %2305 = vmatpush1.bf16.msra.mxu0 %v2042
    %2306 = vmatprep.subr.bf16.mxu0 %v2045
    %2307 = vmatpush1.bf16.msra.mxu0 %v2044
    %2308 = vmatprep.subr.bf16.mxu0 %v2047
    %2309 = vmatpush1.bf16.msra.mxu0 %v2046
    %2310 = vmatprep.subr.bf16.mxu0 %v2049
    %2311 = vmatpush1.bf16.msra.mxu0 %v2048
    %2312 = vmatprep.subr.bf16.mxu0 %v2051
    %2313 = vmatpush1.bf16.msra.mxu0 %v2050
    %2314 = vmatprep.subr.bf16.mxu0 %v2053
    %2315 = vmatpush1.bf16.msra.mxu0 %v2052
    %2316 = vmatprep.mubr.bf16.mxu0 %v2277
    %2317 = vmatmul.mubr.bf16.gmra.mrb[0].mxu0 %v2276
    %v2318 = vpop.f32.mrb[0].mxu0
    %v2319 = vadd.f32 0.0, %v2318
    %v2320 = vpop.f32.mrb[0].mxu0
    %v2321 = vadd.f32 0.0, %v2320
    %v2322 = vpop.f32.mrb[0].mxu0
    %v2323 = vadd.f32 0.0, %v2322
    %v2324 = vpop.f32.mrb[0].mxu0
    %v2325 = vadd.f32 0.0, %v2324
    %2326 = vmatprep.mubr.bf16.mxu0 %v2281
    %2327 = vmatmul.mubr.bf16.gmra.mrb[0].mxu0 %v2280
    %v2328 = vpop.f32.mrb[0].mxu0
    %v2329 = vadd.f32 0.0, %v2328
    %v2330 = vpop.f32.mrb[0].mxu0
    %v2331 = vadd.f32 0.0, %v2330
    %v2332 = vpop.f32.mrb[0].mxu0
    %v2333 = vadd.f32 0.0, %v2332
    %v2334 = vpop.f32.mrb[0].mxu0
    %v2335 = vadd.f32 0.0, %v2334
    %2336 = vdwg.mxu0
    %2337 = vmatprep.subr.bf16.mxu0 %v2055
    %2338 = vmatpush1.bf16.msra.mxu0 %v2054
    %2339 = vmatprep.subr.bf16.mxu0 %v2057
    %2340 = vmatpush1.bf16.msra.mxu0 %v2056
    %2341 = vmatprep.subr.bf16.mxu0 %v2059
    %2342 = vmatpush1.bf16.msra.mxu0 %v2058
    %2343 = vmatprep.subr.bf16.mxu0 %v2061
    %2344 = vmatpush1.bf16.msra.mxu0 %v2060
    %2345 = vmatprep.subr.bf16.mxu0 %v2063
    %2346 = vmatpush1.bf16.msra.mxu0 %v2062
    %2347 = vmatprep.subr.bf16.mxu0 %v2065
    %2348 = vmatpush1.bf16.msra.mxu0 %v2064
    %2349 = vmatprep.subr.bf16.mxu0 %v2067
    %2350 = vmatpush1.bf16.msra.mxu0 %v2066
    %2351 = vmatprep.subr.bf16.mxu0 %v2069
    %2352 = vmatpush1.bf16.msra.mxu0 %v2068
    %2353 = vmatprep.subr.bf16.mxu0 %v2071
    %2354 = vmatpush1.bf16.msra.mxu0 %v2070
    %2355 = vmatprep.subr.bf16.mxu0 %v2073
    %2356 = vmatpush1.bf16.msra.mxu0 %v2072
    %2357 = vmatprep.subr.bf16.mxu0 %v2075
    %2358 = vmatpush1.bf16.msra.mxu0 %v2074
    %2359 = vmatprep.subr.bf16.mxu0 %v2077
    %2360 = vmatpush1.bf16.msra.mxu0 %v2076
    %2361 = vmatprep.subr.bf16.mxu0 %v2079
    %2362 = vmatpush1.bf16.msra.mxu0 %v2078
    %2363 = vmatprep.subr.bf16.mxu0 %v2081
    %2364 = vmatpush1.bf16.msra.mxu0 %v2080
    %2365 = vmatprep.subr.bf16.mxu0 %v2083
    %2366 = vmatpush1.bf16.msra.mxu0 %v2082
    %2367 = vmatprep.subr.bf16.mxu0 %v2085
    %2368 = vmatpush1.bf16.msra.mxu0 %v2084
    %2369 = vmatprep.mubr.bf16.mxu0 %v2279
    %2370 = vmatmul.mubr.bf16.gmra.mrb[0].mxu0 %v2278
    %v2371 = vpop.f32.mrb[0].mxu0
    %v2372 = vadd.f32 %v2319, %v2371
    %v2373 = vpop.f32.mrb[0].mxu0
    %v2374 = vadd.f32 %v2321, %v2373
    %v2375 = vpop.f32.mrb[0].mxu0
    %v2376 = vadd.f32 %v2323, %v2375
    %v2377 = vpop.f32.mrb[0].mxu0
    %v2378 = vadd.f32 %v2325, %v2377
    %2379 = vmatprep.mubr.bf16.mxu0 %v2283
    %2380 = vmatmul.mubr.bf16.gmra.mrb[0].mxu0 %v2282
    %v2381 = vpop.f32.mrb[0].mxu0
    %v2382 = vadd.f32 %v2329, %v2381
    %v2383 = vpop.f32.mrb[0].mxu0
    %v2384 = vadd.f32 %v2331, %v2383
    %v2385 = vpop.f32.mrb[0].mxu0
    %v2386 = vadd.f32 %v2333, %v2385
    %v2387 = vpop.f32.mrb[0].mxu0
    %v2388 = vadd.f32 %v2335, %v2387
    %2389 = vdwg.mxu0
    %v2390 = vpack.c.bf16 %v2376, %v2372
    %v2391 = vpack.c.bf16 %v2378, %v2374
    %v2392 = vpack.c.bf16 %v2386, %v2382
    %v2393 = vpack.c.bf16 %v2388, %v2384
    %v2394 = vld [vmem:[%s1] sm:$0xf]
    %v2395 = vld [vmem:[%s1 + $0x4] sm:$0xf]
    %v2396 = vld [vmem:[%s1 + $0x8] sm:$0xf]
    %v2397 = vld [vmem:[%s1 + $0xc] sm:$0xf]
    %v2402 = vunpack.c.l.b16 %v2394
    %v2403 = vunpack.c.l.b16 %v2395
    %v2404 = vunpack.c.l.b16 %v2396
    %v2405 = vunpack.c.l.b16 %v2397
    %v2406 = vpack.c.b16 %v2403, %v2402
    %v2407 = vpack.c.b16 %v2405, %v2404
    %vm2408 = vcmask 261120
    %v2410 = vsel %vm2408, %v2406, 0
    %v2413 = vsel %vm2408, %v2407, 0
    %2415 = vmatprep.subr.bf16.mxu0 %v2257
    %2416 = vmatpush1.bf16.msra.mxu0 %v2256
    %2417 = vmatprep.subr.bf16.mxu0 %v2259
    %2418 = vmatpush1.bf16.msra.mxu0 %v2258
    %2419 = vmatprep.subr.bf16.mxu0 0
    %2420 = vmatpush1.bf16.msra.mxu0 0
    %2421 = vmatprep.subr.bf16.mxu0 0
    %2422 = vmatpush1.bf16.msra.mxu0 0
    %2423 = vmatprep.subr.bf16.mxu0 0
    %2424 = vmatpush1.bf16.msra.mxu0 0
    %2425 = vmatprep.subr.bf16.mxu0 0
    %2426 = vmatpush1.bf16.msra.mxu0 0
    %2427 = vmatprep.subr.bf16.mxu0 0
    %2428 = vmatpush1.bf16.msra.mxu0 0
    %2429 = vmatprep.subr.bf16.mxu0 0
    %2430 = vmatpush1.bf16.msra.mxu0 0
    %2431 = vmatprep.subr.bf16.mxu0 0
    %2432 = vmatpush1.bf16.msra.mxu0 0
    %2433 = vmatprep.subr.bf16.mxu0 0
    %2434 = vmatpush1.bf16.msra.mxu0 0
    %2435 = vmatprep.subr.bf16.mxu0 0
    %2436 = vmatpush1.bf16.msra.mxu0 0
    %2437 = vmatprep.subr.bf16.mxu0 0
    %2438 = vmatpush1.bf16.msra.mxu0 0
    %2439 = vmatprep.subr.bf16.mxu0 0
    %2440 = vmatpush1.bf16.msra.mxu0 0
    %2441 = vmatprep.subr.bf16.mxu0 0
    %2442 = vmatpush1.bf16.msra.mxu0 0
    %2443 = vmatprep.subr.bf16.mxu0 0
    %2444 = vmatpush1.bf16.msra.mxu0 0
    %2445 = vmatprep.subr.bf16.mxu0 0
    %2446 = vmatpush1.bf16.msra.mxu0 0
    %2447 = vmatprep.mubr.bf16.mxu0 0
    %2448 = vmatmul.mubr.bf16.gmra.mrb[0].mxu0 %v2410
    %v2449 = vpop.f32.mrb[0].mxu0
    %v2450 = vadd.f32 0.0, %v2449
    %v2451 = vpop.f32.mrb[0].mxu0
    %v2452 = vadd.f32 0.0, %v2451
    %v2453 = vpop.f32.mrb[0].mxu0
    %v2454 = vadd.f32 0.0, %v2453
    %v2455 = vpop.f32.mrb[0].mxu0
    %v2456 = vadd.f32 0.0, %v2455
    %2457 = vmatprep.mubr.bf16.mxu0 0
    %2458 = vmatmul.mubr.bf16.gmra.mrb[0].mxu0 %v2413
    %v2459 = vpop.f32.mrb[0].mxu0
    %v2460 = vadd.f32 0.0, %v2459
    %v2461 = vpop.f32.mrb[0].mxu0
    %v2462 = vadd.f32 0.0, %v2461
    %v2463 = vpop.f32.mrb[0].mxu0
    %v2464 = vadd.f32 0.0, %v2463
    %v2465 = vpop.f32.mrb[0].mxu0
    %v2466 = vadd.f32 0.0, %v2465
    %2467 = vdwg.mxu0
    %2468 = vmatprep.subr.bf16.mxu0 %v2391
    %2469 = vmatpush1.bf16.msra.mxu0 %v2390
    %2470 = vmatprep.subr.bf16.mxu0 %v2393
    %2471 = vmatpush1.bf16.msra.mxu0 %v2392
    %2472 = vmatprep.subr.bf16.mxu0 0
    %2473 = vmatpush1.bf16.msra.mxu0 0
    %2474 = vmatprep.subr.bf16.mxu0 0
    %2475 = vmatpush1.bf16.msra.mxu0 0
    %2476 = vmatprep.subr.bf16.mxu0 0
    %2477 = vmatpush1.bf16.msra.mxu0 0
    %2478 = vmatprep.subr.bf16.mxu0 0
    %2479 = vmatpush1.bf16.msra.mxu0 0
    %2480 = vmatprep.subr.bf16.mxu0 0
    %2481 = vmatpush1.bf16.msra.mxu0 0
    %2482 = vmatprep.subr.bf16.mxu0 0
    %2483 = vmatpush1.bf16.msra.mxu0 0
    %2484 = vmatprep.subr.bf16.mxu0 0
    %2485 = vmatpush1.bf16.msra.mxu0 0
    %2486 = vmatprep.subr.bf16.mxu0 0
    %2487 = vmatpush1.bf16.msra.mxu0 0
    %2488 = vmatprep.subr.bf16.mxu0 0
    %2489 = vmatpush1.bf16.msra.mxu0 0
    %2490 = vmatprep.subr.bf16.mxu0 0
    %2491 = vmatpush1.bf16.msra.mxu0 0
    %2492 = vmatprep.subr.bf16.mxu0 0
    %2493 = vmatpush1.bf16.msra.mxu0 0
    %2494 = vmatprep.subr.bf16.mxu0 0
    %2495 = vmatpush1.bf16.msra.mxu0 0
    %2496 = vmatprep.subr.bf16.mxu0 0
    %2497 = vmatpush1.bf16.msra.mxu0 0
    %2498 = vmatprep.subr.bf16.mxu0 0
    %2499 = vmatpush1.bf16.msra.mxu0 0
    %2500 = vmatprep.mubr.bf16.mxu0 0
    %2501 = vmatmul.mubr.bf16.gmra.mrb[0].mxu0 %v2410
    %v2502 = vpop.f32.mrb[0].mxu0
    %v2503 = vadd.f32 0.0, %v2502
    %v2504 = vpop.f32.mrb[0].mxu0
    %v2505 = vadd.f32 0.0, %v2504
    %v2506 = vpop.f32.mrb[0].mxu0
    %v2507 = vadd.f32 0.0, %v2506
    %v2508 = vpop.f32.mrb[0].mxu0
    %v2509 = vadd.f32 0.0, %v2508
    %2510 = vmatprep.mubr.bf16.mxu0 0
    %2511 = vmatmul.mubr.bf16.gmra.mrb[0].mxu0 %v2413
    %v2512 = vpop.f32.mrb[0].mxu0
    %v2513 = vadd.f32 0.0, %v2512
    %v2514 = vpop.f32.mrb[0].mxu0
    %v2515 = vadd.f32 0.0, %v2514
    %v2516 = vpop.f32.mrb[0].mxu0
    %v2517 = vadd.f32 0.0, %v2516
    %v2518 = vpop.f32.mrb[0].mxu0
    %v2519 = vadd.f32 0.0, %v2518
    %2520 = vdwg.mxu0
    %v2521 = vmax.f32 %v2450, -5.0
    %v2522 = vmax.f32 %v2452, -5.0
    %v2523 = vmax.f32 %v2503, -5.0
    %v2524 = vmax.f32 %v2505, -5.0
    %v2525 = vmax.f32 %v2454, -5.0
    %v2526 = vmax.f32 %v2456, -5.0
    %v2527 = vmax.f32 %v2507, -5.0
    %v2528 = vmax.f32 %v2509, -5.0
    %v2529 = vmax.f32 %v2460, -5.0
    %v2530 = vmax.f32 %v2462, -5.0
    %v2531 = vmax.f32 %v2513, -5.0
    %v2532 = vmax.f32 %v2515, -5.0
    %v2533 = vmax.f32 %v2464, -5.0
    %v2534 = vmax.f32 %v2466, -5.0
    %v2535 = vmax.f32 %v2517, -5.0
    %v2536 = vmax.f32 %v2519, -5.0
    %v2537 = vmin.f32 %v2521, 5.0
    %v2538 = vmin.f32 %v2522, 5.0
    %v2539 = vmin.f32 %v2523, 5.0
    %v2540 = vmin.f32 %v2524, 5.0
    %v2541 = vmin.f32 %v2525, 5.0
    %v2542 = vmin.f32 %v2526, 5.0
    %v2543 = vmin.f32 %v2527, 5.0
    %v2544 = vmin.f32 %v2528, 5.0
    %v2545 = vmin.f32 %v2529, 5.0
    %v2546 = vmin.f32 %v2530, 5.0
    %v2547 = vmin.f32 %v2531, 5.0
    %v2548 = vmin.f32 %v2532, 5.0
    %v2549 = vmin.f32 %v2533, 5.0
    %v2550 = vmin.f32 %v2534, 5.0
    %v2551 = vmin.f32 %v2535, 5.0
    %v2552 = vmin.f32 %v2536, 5.0
    %v2553 = vld [vmem:[%s2] sm:$0xff]
    %v2554 = vld [vmem:[%s2 + $0x8] sm:$0xff]
    %v2555 = vld [vmem:[%s2 + $0x10] sm:$0xff]
    %v2556 = vld [vmem:[%s2 + $0x18] sm:$0xff]
    %2558 = vset.pattern.permute.xlu0 0
    %2559 = vperm.xlu0 %2558, %v2553
    %v2560 = vpop.permute.xlu0 %2559
    %2563 = vset.pattern.permute.xlu0 0
    %2564 = vperm.xlu0 %2563, %v2554
    %v2565 = vpop.permute.xlu0 %2564
    %2568 = vset.pattern.permute.xlu0 0
    %2569 = vperm.xlu0 %2568, %v2555
    %v2570 = vpop.permute.xlu0 %2569
    %2573 = vset.pattern.permute.xlu0 0
    %2574 = vperm.xlu0 %2573, %v2556
    %v2575 = vpop.permute.xlu0 %2574
    %v2577 = vmul.f32 %v2537, %v2560
    %v2578 = vmul.f32 %v2538, %v2560
    %v2579 = vmul.f32 %v2539, %v2560
    %v2580 = vmul.f32 %v2540, %v2560
    %v2581 = vmul.f32 %v2541, %v2565
    %v2582 = vmul.f32 %v2542, %v2565
    %v2583 = vmul.f32 %v2543, %v2565
    %v2584 = vmul.f32 %v2544, %v2565
    %v2585 = vmul.f32 %v2545, %v2570
    %v2586 = vmul.f32 %v2546, %v2570
    %v2587 = vmul.f32 %v2547, %v2570
    %v2588 = vmul.f32 %v2548, %v2570
    %v2589 = vmul.f32 %v2549, %v2575
    %v2590 = vmul.f32 %v2550, %v2575
    %v2591 = vmul.f32 %v2551, %v2575
    %v2592 = vmul.f32 %v2552, %v2575
    %2593 = vst [vmem:[%s4] sm:$0xff] %v2577
    %2594 = vst [vmem:[%s4 + $0x8] sm:$0xff] %v2578
    %2595 = vst [vmem:[%s4 + $0x10] sm:$0xff] %v2581
    %2596 = vst [vmem:[%s4 + $0x18] sm:$0xff] %v2582
    %2597 = vst [vmem:[%s4 + $0x20] sm:$0xff] %v2585
    %2598 = vst [vmem:[%s4 + $0x28] sm:$0xff] %v2586
    %2599 = vst [vmem:[%s4 + $0x30] sm:$0x3f] %v2589
    %2600 = vst [vmem:[%s4 + $0x38] sm:$0x3f] %v2590
    %s2601 = scalar_lea.vmem %s4, 64
    %2602 = vst [vmem:[%s2601] sm:$0xff] %v2579
    %2603 = vst [vmem:[%s2601 + $0x8] sm:$0xff] %v2580
    %2604 = vst [vmem:[%s2601 + $0x10] sm:$0xff] %v2583
    %2605 = vst [vmem:[%s2601 + $0x18] sm:$0xff] %v2584
    %2606 = vst [vmem:[%s2601 + $0x20] sm:$0xff] %v2587
    %2607 = vst [vmem:[%s2601 + $0x28] sm:$0xff] %v2588
    %2608 = vst [vmem:[%s2601 + $0x30] sm:$0x3f] %v2591
    %2609 = vst [vmem:[%s2601 + $0x38] sm:$0x3f] %v2592
    // Predicated region
    $region22: #{tpu_custom_call.1} parent=1 // pred_check
      _
    $region23: #{tpu_custom_call.1} parent=1 // pred_check_branch
      %2611 = sbr.rel (0) target = $region25
    $region24: #{tpu_custom_call.1} parent=1 // pred_region
      _
    $region25: #{tpu_custom_call.1} parent=1 // pred_fallthru
      _
    // Predicated region
    $region26: #{tpu_custom_call.1} parent=1 // pred_check
      _
    $region27: #{tpu_custom_call.1} parent=1 // pred_check_branch
      %2613 = sbr.rel (0) target = $region29
    $region28: #{tpu_custom_call.1} parent=1 // pred_region
      _
    $region29: #{tpu_custom_call.1} parent=1 // pred_fallthru
      _
    %2614 = vsyncpa [#allocation4], 1

</llo_original>
